<compile_context>
chip_gen: v5e
topology: v5e:2x2
jax: 0.10.0
libtpu: 0.0.40
codegen_flags: <defaults>
</compile_context>

<pallas_src>
import math

import jax
import jax.numpy as jnp
import numpy as np
from jax.experimental import pallas as pl


OUT_LANES = 128  # lane-dense output width; real outputs occupy lanes [0, S)


# ----------------------------------------------------------------------------
# Fused Pallas kernel
# ----------------------------------------------------------------------------
def make_rcnn_kernel(n_layers, hidden):
    H = hidden
    BF = jnp.bfloat16
    F32 = jnp.float32

    def gate_nonlin(gates, c):
        # gates: (B, 4H) f32, PyTorch gate order [i, f, g, o].
        # One sigmoid + one tanh over the full vreg, then slice (fewer EUP
        # pushes on the serial path than slicing first).
        sig = jax.nn.sigmoid(gates)
        th = jnp.tanh(gates)
        i_g = sig[:, 0:H]
        f_g = sig[:, H:2 * H]
        o_g = sig[:, 3 * H:4 * H]
        g_g = th[:, 2 * H:3 * H]
        c_new = f_g * c + i_g * g_g
        h_new = o_g * jnp.tanh(c_new)
        return h_new, c_new

    def kernel(enc_ref, dec_ref, prev0_ref, xstat_ref, *rest):
        # rest = [enc (w_x, w_h, b) x n_layers,
        #         dec w_x_seq, w_prev, w_h, b,
        #         fc w1_stat, w1_h, b1, w2, b2, w3, b3, w4, b4, out_ref]
        out_ref = rest[-1]
        refs = rest[:-1]
        enc_w = [(refs[3 * l], refs[3 * l + 1], refs[3 * l + 2])
                 for l in range(n_layers)]
        base = 3 * n_layers
        wdx_ref, wdp_ref, wdh_ref, bd_ref = refs[base:base + 4]
        (w1s_ref, w1h_ref, b1_ref, w2_ref, b2_ref,
         w3_ref, b3_ref, w4_ref, b4_ref) = refs[base + 4:base + 13]

        B = xstat_ref.shape[0]
        T = enc_ref.shape[0] // B
        S = dec_ref.shape[0] // B

        # ------------- encoder: stacked LSTM, time loop fully unrolled ------
        seq_x = enc_ref[...]                                  # (T*B, D_l) f32
        h = c = None
        for li, (wx_ref, wh_ref, b_ref) in enumerate(enc_w):
            last = (li == n_layers - 1)
            # Hoisted input projection for all T steps, bias folded in.
            xproj = (jnp.dot(seq_x.astype(BF), wx_ref[...],
                             preferred_element_type=F32)
                     + b_ref[...])                            # (T*B, 4H) f32
            wh = wh_ref[...]                                  # (H, 4H) bf16
            h = jnp.zeros((B, H), F32)
            c = jnp.zeros((B, H), F32)
            hs = []
            for t in range(T):
                gates = (xproj[t * B:(t + 1) * B]
                         + jnp.dot(h.astype(BF), wh,
                                   preferred_element_type=F32))
                h, c = gate_nonlin(gates, c)
                if not last:              # h_seq of the last layer is dead
                    hs.append(h)
            if not last:
                seq_x = jnp.concatenate(hs, axis=0)           # (T*B, H)
        hn, cn = h, c

        # ------------- decoder: LSTMCell + fc head, autoregressive ----------
        # Hoisted seq-feature projection for all S steps, bias folded in.
        dproj = (jnp.dot(dec_ref[...].astype(BF), wdx_ref[...],
                         preferred_element_type=F32)
                 + bd_ref[...])                               # (S*B, 4H)
        # Loop-invariant x_stat half of fc1 (+ its bias), precomputed once.
        a1_stat = (jnp.dot(xstat_ref[...].astype(BF), w1s_ref[...],
                           preferred_element_type=F32)
                   + b1_ref[...])                             # (B, 128)

        wdh = wdh_ref[...]                                    # (H, 4H) bf16
        wprev = wdp_ref[...]                                  # (1, 4H) f32
        w1h = w1h_ref[...]                                    # (H, 128) bf16
        w2 = w2_ref[...]                                      # (128, 64) bf16
        w3 = w3_ref[...]                                      # (64, 32) bf16
        w4 = w4_ref[...]                                      # (32, 1) f32
        # Hoisted bias broadcasts (JAX does not CSE broadcast_in_dim).
        b2 = jnp.broadcast_to(b2_ref[...], (B, w2.shape[1]))
        b3 = jnp.broadcast_to(b3_ref[...], (B, w3.shape[1]))
        b4 = jnp.broadcast_to(b4_ref[...], (B, w4.shape[1]))

        prev = prev0_ref[...]                                 # (B, 1) f32
        outs = []
        for t in range(S):
            gates = (dproj[t * B:(t + 1) * B]
                     + prev * wprev          # VPU outer-product feedback
                     + jnp.dot(hn.astype(BF), wdh,
                               preferred_element_type=F32))
            hn, cn = gate_nonlin(gates, cn)

            a = jnp.maximum(
                a1_stat + jnp.dot(hn.astype(BF), w1h,
                                  preferred_element_type=F32), 0.0)
            a = jnp.maximum(
                jnp.dot(a.astype(BF), w2,
                        preferred_element_type=F32) + b2, 0.0)
            a = jnp.maximum(
                jnp.dot(a.astype(BF), w3,
                        preferred_element_type=F32) + b3, 0.0)
            out = jnp.maximum(
                jnp.dot(a, w4, preferred_element_type=F32) + b4, 0.0)  # (B, 1)
            prev = out
            outs.append(out)

        # Lane-dense writeback: single unmasked (B, 128) store.
        pad = jnp.zeros((B, out_ref.shape[1] - S), F32)
        out_ref[...] = jnp.concatenate(outs + [pad], axis=1)

    return kernel


# ----------------------------------------------------------------------------
# pallas_call wrapper
# ----------------------------------------------------------------------------
def rcnn_pallas(params, cfg, enc_flat, dec_flat, enc_last, x_stat):
    """enc_flat: (T*B, D) f32, dec_flat: (S*B, D-1) f32,
    enc_last: (B, 1) f32, x_stat: (B, E) f32.  Returns (B, OUT_LANES) f32."""
    B, E = x_stat.shape
    H = cfg['hidden']
    bf16 = jnp.bfloat16

    flat = []
    for (wxT, whT, b) in params['lstm_encoder']:
        flat += [wxT.astype(bf16), whT.astype(bf16), b]   # (in_l,4H),(H,4H),(1,4H)
    wxT, whT, bd = params['lstm_decoder']
    flat += [wxT[:-1].astype(bf16),    # (D-1, 4H)  seq-feature rows
             wxT[-1:],                 # (1, 4H)    prev-feedback row (f32, VPU)
             whT.astype(bf16),         # (H, 4H)
             bd]                       # (1, 4H)
    (W1, b1), (W2, b2), (W3, b3), (W4, b4) = params['fc']
    flat += [W1[:E].astype(bf16), W1[E:].astype(bf16), b1,
             W2.astype(bf16), b2, W3.astype(bf16), b3,
             W4, b4]                   # W4 (32,1) stays f32 (tiny final dot)

    kernel = make_rcnn_kernel(len(params['lstm_encoder']), H)

    # Grid-less: the whole problem is one kernel invocation; every operand is
    # a full-array VMEM block (a few KB each), so no BlockSpec pipelining is
    # needed and VMEM footprint is << scoped default on all generations.
    return pl.pallas_call(
        kernel,
        out_shape=jax.ShapeDtypeStruct((B, OUT_LANES), jnp.float32),
    )(enc_flat, dec_flat, enc_last, x_stat, *flat)


# ----------------------------------------------------------------------------
# Parameter init (deterministic, mirrors the nn.Module's shapes)
# ----------------------------------------------------------------------------
def init_params(cfg, key):
    n_stat = len(cfg['cat_static'])
    H = cfg['hidden']
    keys = iter(jax.random.split(key, 64))

    def unif(shape, bound):
        return jax.random.uniform(next(keys), shape, jnp.float32, -bound, bound)

    params = {}
    params['static_embd'] = [
        jax.random.normal(next(keys), (n, e), jnp.float32)
        for n, e in zip(cfg['n_class'][:n_stat], cfg['embd_size'][:n_stat])]
    params['seq_embd'] = [
        jax.random.normal(next(keys), (n, e), jnp.float32)
        for n, e in zip(cfg['n_class'][n_stat:], cfg['embd_size'][n_stat:])]

    D = sum(cfg['embd_size'][n_stat:]) + len(cfg['con'])
    k = 1.0 / math.sqrt(H)

    enc_layers = []
    d_in = D
    for _ in range(cfg['layer']):
        wih = unif((4 * H, d_in), k)
        whh = unif((4 * H, H), k)
        bih = unif((4 * H,), k)
        bhh = unif((4 * H,), k)
        enc_layers.append((wih.T, whh.T, (bih + bhh).reshape(1, 4 * H)))
        d_in = H
    params['lstm_encoder'] = enc_layers

    wih = unif((4 * H, D), k)
    whh = unif((4 * H, H), k)
    bih = unif((4 * H,), k)
    bhh = unif((4 * H,), k)
    params['lstm_decoder'] = (wih.T, whh.T, (bih + bhh).reshape(1, 4 * H))

    E = sum(cfg['embd_size'][:n_stat])
    dims = [(H + E, 128), (128, 64), (64, 32), (32, 1)]
    fc = []
    for din, dout in dims:
        kb = 1.0 / math.sqrt(din)
        W = unif((dout, din), kb)
        bb = unif((dout,), kb)
        fc.append((W.T, bb.reshape(1, dout)))
    params['fc'] = fc
    return params


# ----------------------------------------------------------------------------
# Full forward (Pallas) and pure-JAX reference
# ----------------------------------------------------------------------------
def rcnn_forward(params, cfg, x, x_seq):
    n_stat = len(cfg['cat_static'])
    n_seq = len(cfg['cat_seq'])
    in_steps = cfg['in_steps']
    out_steps = cfg['out_steps']
    B = x.shape[0]

    x = x.astype(jnp.int32)
    # embeddings (gather) — plain-JAX glue outside the kernel
    x_stat = jnp.concatenate(
        [params['static_embd'][i][x[:, i]] for i in range(n_stat)], axis=1)
    idx = x_seq[:, :, :n_seq].astype(jnp.int32)
    con = x_seq[:, :, n_seq:].astype(jnp.float32)
    seq_e = [params['seq_embd'][i][idx[:, :, i]] for i in range(n_seq)]
    xs = jnp.concatenate(seq_e + [con], axis=2)               # (B, T_total, D)
    D = xs.shape[2]

    x_tbd = jnp.transpose(xs, (1, 0, 2))                      # time-major
    enc_flat = x_tbd[:in_steps].reshape(in_steps * B, D)      # (T*B, D)
    dec_flat = x_tbd[in_steps:in_steps + out_steps, :, :-1].reshape(
        out_steps * B, D - 1)                                 # (S*B, D-1)
    enc_last = x_tbd[in_steps - 1, :, -1:]                    # (B, 1)

    out = rcnn_pallas(params, cfg, enc_flat, dec_flat, enc_last, x_stat)
    return out[:, :out_steps, None]                           # (B, S, 1)


def rcnn_reference(params, cfg, x, x_seq):
    n_stat = len(cfg['cat_static'])
    n_seq = len(cfg['cat_seq'])
    in_steps, out_steps, H = cfg['in_steps'], cfg['out_steps'], cfg['hidden']
    B = x.shape[0]
    x = x.astype(jnp.int32)
    x_stat = jnp.concatenate(
        [params['static_embd'][i][x[:, i]] for i in range(n_stat)], axis=1)
    idx = x_seq[:, :, :n_seq].astype(jnp.int32)
    con = x_seq[:, :, n_seq:].astype(jnp.float32)
    seq_e = [params['seq_embd'][i][idx[:, :, i]] for i in range(n_seq)]
    xs = jnp.concatenate(seq_e + [con], axis=2)

    def cell(x_t, h, c, wihT, whhT, b):
        gates = x_t @ wihT + h @ whhT + b
        i = jax.nn.sigmoid(gates[:, :H])
        f = jax.nn.sigmoid(gates[:, H:2 * H])
        g = jnp.tanh(gates[:, 2 * H:3 * H])
        o = jax.nn.sigmoid(gates[:, 3 * H:])
        c = f * c + i * g
        return o * jnp.tanh(c), c

    enc_in = xs[:, :in_steps]
    seq = enc_in
    h = c = None
    for (wihT, whhT, b) in params['lstm_encoder']:
        h = jnp.zeros((B, H)); c = jnp.zeros((B, H)); hs = []
        for t in range(in_steps):
            h, c = cell(seq[:, t], h, c, wihT, whhT, b)
            hs.append(h)
        seq = jnp.stack(hs, axis=1)
    hn, cn = h, c

    wihT, whhT, bd = params['lstm_decoder']
    dec_in = xs[:, in_steps:, :-1]
    prev = enc_in[:, -1, -1:]
    outs = []
    for i in range(out_steps):
        step_in = jnp.concatenate([dec_in[:, i], prev], axis=1)
        hn, cn = cell(step_in, hn, cn, wihT, whhT, bd)
        a = jnp.concatenate([x_stat, hn], axis=1)
        for (W, bb) in params['fc']:
            a = jnp.maximum(a @ W + bb, 0.0)
        prev = a
        outs.append(a)
    return jnp.concatenate(outs, axis=1).reshape(B, -1, 1)


# ----------------------------------------------------------------------------
if __name__ == "__main__":
    cfg = dict(
        con=['c0', 'c1', 'c2'],
        cat_static=['s0', 's1'],
        cat_seq=['q0', 'q1'],
        n_class=[10, 8, 12, 6],          # first 2 static, last 2 sequential
        embd_size=[4, 3, 5, 4],          # static: 4+3=7, seq: 5+4=9
        hidden=32,
        layer=1,
        in_steps=8,
        out_steps=4,
        batch_normalization=False,
    )
    B = 2
    T = cfg['in_steps'] + cfg['out_steps']
    n_stat = len(cfg['cat_static'])
    n_seq = len(cfg['cat_seq'])

    key = jax.random.PRNGKey(0)
    kp, kx, kq, kc = jax.random.split(key, 4)
    params = init_params(cfg, kp)

    x_cols = []
    for i in range(n_stat):
        kx, sub = jax.random.split(kx)
        x_cols.append(jax.random.randint(sub, (B, 1), 0, cfg['n_class'][i]))
    x = jnp.concatenate(x_cols, axis=1).astype(jnp.int32)          # (2, 2)

    seq_cols = []
    for i in range(n_seq):
        kq, sub = jax.random.split(kq)
        seq_cols.append(
            jax.random.randint(sub, (B, T, 1), 0,
                               cfg['n_class'][n_stat + i]).astype(jnp.float32))
    x_seq_con = jax.random.normal(kc, (B, T, len(cfg['con'])), jnp.float32)
    x_seq = jnp.concatenate(seq_cols + [x_seq_con], axis=2)        # (2, 12, 5)

    out = jax.block_until_ready(rcnn_forward(params, cfg, x, x_seq))
    assert out.shape == (B, cfg['out_steps'], 1)

    ref = rcnn_reference(params, cfg, x, x_seq)
    # Tolerance covers explicit bf16 MXU operands in the kernel vs. the f32
    # XLA reference (which itself runs default-precision TPU matmuls) across
    # the 12-cell LSTM chain + 4-layer ReLU head.
    np.testing.assert_allclose(np.asarray(out), np.asarray(ref),
                               rtol=2e-2, atol=2e-2)
    print("KERNEL_OK")
</pallas_src>

<mosaic_0001>
module attributes {stable_mosaic.version = 11 : i64} {
  func.func @kernel(%arg0: memref<16x12xf32, #tpu.memory_space<vmem>>, %arg1: memref<8x11xf32, #tpu.memory_space<vmem>>, %arg2: memref<2x1xf32, #tpu.memory_space<vmem>>, %arg3: memref<2x7xf32, #tpu.memory_space<vmem>>, %arg4: memref<12x128xbf16, #tpu.memory_space<vmem>>, %arg5: memref<32x128xbf16, #tpu.memory_space<vmem>>, %arg6: memref<1x128xf32, #tpu.memory_space<vmem>>, %arg7: memref<11x128xbf16, #tpu.memory_space<vmem>>, %arg8: memref<1x128xf32, #tpu.memory_space<vmem>>, %arg9: memref<32x128xbf16, #tpu.memory_space<vmem>>, %arg10: memref<1x128xf32, #tpu.memory_space<vmem>>, %arg11: memref<7x128xbf16, #tpu.memory_space<vmem>>, %arg12: memref<32x128xbf16, #tpu.memory_space<vmem>>, %arg13: memref<1x128xf32, #tpu.memory_space<vmem>>, %arg14: memref<128x64xbf16, #tpu.memory_space<vmem>>, %arg15: memref<1x64xf32, #tpu.memory_space<vmem>>, %arg16: memref<64x32xbf16, #tpu.memory_space<vmem>>, %arg17: memref<1x32xf32, #tpu.memory_space<vmem>>, %arg18: memref<32x1xf32, #tpu.memory_space<vmem>>, %arg19: memref<1x1xf32, #tpu.memory_space<vmem>>, %arg20: memref<2x128xf32, #tpu.memory_space<vmem>>) attributes {dimension_semantics = [], scalar_prefetch = 0 : i64, scratch_operands = 0 : i64, tpu.core_type = #tpu.core_type<tc>} {
    %c0 = arith.constant 0 : index
    %c0_0 = arith.constant 0 : index
    %0 = vector.load %arg0[%c0, %c0_0] : memref<16x12xf32, #tpu.memory_space<vmem>>, vector<16x12xf32>
    %1 = arith.truncf %0 : vector<16x12xf32> to vector<16x12xbf16>
    %c0_1 = arith.constant 0 : index
    %c0_2 = arith.constant 0 : index
    %2 = vector.load %arg4[%c0_1, %c0_2] : memref<12x128xbf16, #tpu.memory_space<vmem>>, vector<12x128xbf16>
    %cst = arith.constant dense<0.000000e+00> : vector<16x128xf32>
    %3 = tpu.matmul %1, %2, %cst {dimension_numbers = #tpu.dot_dimension_numbers<[1], [0], [0], [1], [0, 0, 1, 1], [], []>} : vector<16x12xbf16>, vector<12x128xbf16>, vector<16x128xf32> -> vector<16x128xf32>
    %c0_3 = arith.constant 0 : index
    %c0_4 = arith.constant 0 : index
    %4 = vector.load %arg6[%c0_3, %c0_4] : memref<1x128xf32, #tpu.memory_space<vmem>>, vector<1x128xf32>
    %5 = vector.broadcast %4 : vector<1x128xf32> to vector<16x128xf32>
    %6 = arith.addf %3, %5 : vector<16x128xf32>
    %c0_5 = arith.constant 0 : index
    %c0_6 = arith.constant 0 : index
    %7 = vector.load %arg5[%c0_5, %c0_6] : memref<32x128xbf16, #tpu.memory_space<vmem>>, vector<32x128xbf16>
    %cst_7 = arith.constant 0.000000e+00 : f32
    %8 = vector.broadcast %cst_7 : f32 to vector<2x32xf32>
    %cst_8 = arith.constant 0.000000e+00 : f32
    %9 = vector.broadcast %cst_8 : f32 to vector<2x32xf32>
    %10 = vector.extract_strided_slice %6 {offsets = [0, 0], sizes = [2, 128], strides = [1, 1]} : vector<16x128xf32> to vector<2x128xf32>
    %11 = arith.truncf %8 : vector<2x32xf32> to vector<2x32xbf16>
    %cst_9 = arith.constant dense<0.000000e+00> : vector<2x128xf32>
    %12 = tpu.matmul %11, %7, %cst_9 {dimension_numbers = #tpu.dot_dimension_numbers<[1], [0], [0], [1], [0, 0, 1, 1], [], []>} : vector<2x32xbf16>, vector<32x128xbf16>, vector<2x128xf32> -> vector<2x128xf32>
    %13 = arith.addf %10, %12 : vector<2x128xf32>
    %14 = arith.negf %13 : vector<2x128xf32>
    %15 = math.exp %14 : vector<2x128xf32>
    %cst_10 = arith.constant 1.000000e+00 : f32
    %16 = vector.broadcast %cst_10 : f32 to vector<2x128xf32>
    %17 = arith.addf %16, %15 : vector<2x128xf32>
    %18 = arith.divf %16, %17 : vector<2x128xf32>
    %19 = math.tanh %13 : vector<2x128xf32>
    %20 = vector.extract_strided_slice %18 {offsets = [0, 0], sizes = [2, 32], strides = [1, 1]} : vector<2x128xf32> to vector<2x32xf32>
    %21 = vector.extract_strided_slice %18 {offsets = [0, 32], sizes = [2, 32], strides = [1, 1]} : vector<2x128xf32> to vector<2x32xf32>
    %22 = vector.extract_strided_slice %18 {offsets = [0, 96], sizes = [2, 32], strides = [1, 1]} : vector<2x128xf32> to vector<2x32xf32>
    %23 = vector.extract_strided_slice %19 {offsets = [0, 64], sizes = [2, 32], strides = [1, 1]} : vector<2x128xf32> to vector<2x32xf32>
    %24 = arith.mulf %21, %9 : vector<2x32xf32>
    %25 = arith.mulf %20, %23 : vector<2x32xf32>
    %26 = arith.addf %24, %25 : vector<2x32xf32>
    %27 = math.tanh %26 : vector<2x32xf32>
    %28 = arith.mulf %22, %27 : vector<2x32xf32>
    %29 = vector.extract_strided_slice %6 {offsets = [2, 0], sizes = [2, 128], strides = [1, 1]} : vector<16x128xf32> to vector<2x128xf32>
    %30 = arith.truncf %28 : vector<2x32xf32> to vector<2x32xbf16>
    %cst_11 = arith.constant dense<0.000000e+00> : vector<2x128xf32>
    %31 = tpu.matmul %30, %7, %cst_11 {dimension_numbers = #tpu.dot_dimension_numbers<[1], [0], [0], [1], [0, 0, 1, 1], [], []>} : vector<2x32xbf16>, vector<32x128xbf16>, vector<2x128xf32> -> vector<2x128xf32>
    %32 = arith.addf %29, %31 : vector<2x128xf32>
    %33 = arith.negf %32 : vector<2x128xf32>
    %34 = math.exp %33 : vector<2x128xf32>
    %cst_12 = arith.constant 1.000000e+00 : f32
    %35 = vector.broadcast %cst_12 : f32 to vector<2x128xf32>
    %36 = arith.addf %35, %34 : vector<2x128xf32>
    %37 = arith.divf %35, %36 : vector<2x128xf32>
    %38 = math.tanh %32 : vector<2x128xf32>
    %39 = vector.extract_strided_slice %37 {offsets = [0, 0], sizes = [2, 32], strides = [1, 1]} : vector<2x128xf32> to vector<2x32xf32>
    %40 = vector.extract_strided_slice %37 {offsets = [0, 32], sizes = [2, 32], strides = [1, 1]} : vector<2x128xf32> to vector<2x32xf32>
    %41 = vector.extract_strided_slice %37 {offsets = [0, 96], sizes = [2, 32], strides = [1, 1]} : vector<2x128xf32> to vector<2x32xf32>
    %42 = vector.extract_strided_slice %38 {offsets = [0, 64], sizes = [2, 32], strides = [1, 1]} : vector<2x128xf32> to vector<2x32xf32>
    %43 = arith.mulf %40, %26 : vector<2x32xf32>
    %44 = arith.mulf %39, %42 : vector<2x32xf32>
    %45 = arith.addf %43, %44 : vector<2x32xf32>
    %46 = math.tanh %45 : vector<2x32xf32>
    %47 = arith.mulf %41, %46 : vector<2x32xf32>
    %48 = vector.extract_strided_slice %6 {offsets = [4, 0], sizes = [2, 128], strides = [1, 1]} : vector<16x128xf32> to vector<2x128xf32>
    %49 = arith.truncf %47 : vector<2x32xf32> to vector<2x32xbf16>
    %cst_13 = arith.constant dense<0.000000e+00> : vector<2x128xf32>
    %50 = tpu.matmul %49, %7, %cst_13 {dimension_numbers = #tpu.dot_dimension_numbers<[1], [0], [0], [1], [0, 0, 1, 1], [], []>} : vector<2x32xbf16>, vector<32x128xbf16>, vector<2x128xf32> -> vector<2x128xf32>
    %51 = arith.addf %48, %50 : vector<2x128xf32>
    %52 = arith.negf %51 : vector<2x128xf32>
    %53 = math.exp %52 : vector<2x128xf32>
    %cst_14 = arith.constant 1.000000e+00 : f32
    %54 = vector.broadcast %cst_14 : f32 to vector<2x128xf32>
    %55 = arith.addf %54, %53 : vector<2x128xf32>
    %56 = arith.divf %54, %55 : vector<2x128xf32>
    %57 = math.tanh %51 : vector<2x128xf32>
    %58 = vector.extract_strided_slice %56 {offsets = [0, 0], sizes = [2, 32], strides = [1, 1]} : vector<2x128xf32> to vector<2x32xf32>
    %59 = vector.extract_strided_slice %56 {offsets = [0, 32], sizes = [2, 32], strides = [1, 1]} : vector<2x128xf32> to vector<2x32xf32>
    %60 = vector.extract_strided_slice %56 {offsets = [0, 96], sizes = [2, 32], strides = [1, 1]} : vector<2x128xf32> to vector<2x32xf32>
    %61 = vector.extract_strided_slice %57 {offsets = [0, 64], sizes = [2, 32], strides = [1, 1]} : vector<2x128xf32> to vector<2x32xf32>
    %62 = arith.mulf %59, %45 : vector<2x32xf32>
    %63 = arith.mulf %58, %61 : vector<2x32xf32>
    %64 = arith.addf %62, %63 : vector<2x32xf32>
    %65 = math.tanh %64 : vector<2x32xf32>
    %66 = arith.mulf %60, %65 : vector<2x32xf32>
    %67 = vector.extract_strided_slice %6 {offsets = [6, 0], sizes = [2, 128], strides = [1, 1]} : vector<16x128xf32> to vector<2x128xf32>
    %68 = arith.truncf %66 : vector<2x32xf32> to vector<2x32xbf16>
    %cst_15 = arith.constant dense<0.000000e+00> : vector<2x128xf32>
    %69 = tpu.matmul %68, %7, %cst_15 {dimension_numbers = #tpu.dot_dimension_numbers<[1], [0], [0], [1], [0, 0, 1, 1], [], []>} : vector<2x32xbf16>, vector<32x128xbf16>, vector<2x128xf32> -> vector<2x128xf32>
    %70 = arith.addf %67, %69 : vector<2x128xf32>
    %71 = arith.negf %70 : vector<2x128xf32>
    %72 = math.exp %71 : vector<2x128xf32>
    %cst_16 = arith.constant 1.000000e+00 : f32
    %73 = vector.broadcast %cst_16 : f32 to vector<2x128xf32>
    %74 = arith.addf %73, %72 : vector<2x128xf32>
    %75 = arith.divf %73, %74 : vector<2x128xf32>
    %76 = math.tanh %70 : vector<2x128xf32>
    %77 = vector.extract_strided_slice %75 {offsets = [0, 0], sizes = [2, 32], strides = [1, 1]} : vector<2x128xf32> to vector<2x32xf32>
    %78 = vector.extract_strided_slice %75 {offsets = [0, 32], sizes = [2, 32], strides = [1, 1]} : vector<2x128xf32> to vector<2x32xf32>
    %79 = vector.extract_strided_slice %75 {offsets = [0, 96], sizes = [2, 32], strides = [1, 1]} : vector<2x128xf32> to vector<2x32xf32>
    %80 = vector.extract_strided_slice %76 {offsets = [0, 64], sizes = [2, 32], strides = [1, 1]} : vector<2x128xf32> to vector<2x32xf32>
    %81 = arith.mulf %78, %64 : vector<2x32xf32>
    %82 = arith.mulf %77, %80 : vector<2x32xf32>
    %83 = arith.addf %81, %82 : vector<2x32xf32>
    %84 = math.tanh %83 : vector<2x32xf32>
    %85 = arith.mulf %79, %84 : vector<2x32xf32>
    %86 = vector.extract_strided_slice %6 {offsets = [8, 0], sizes = [2, 128], strides = [1, 1]} : vector<16x128xf32> to vector<2x128xf32>
    %87 = arith.truncf %85 : vector<2x32xf32> to vector<2x32xbf16>
    %cst_17 = arith.constant dense<0.000000e+00> : vector<2x128xf32>
    %88 = tpu.matmul %87, %7, %cst_17 {dimension_numbers = #tpu.dot_dimension_numbers<[1], [0], [0], [1], [0, 0, 1, 1], [], []>} : vector<2x32xbf16>, vector<32x128xbf16>, vector<2x128xf32> -> vector<2x128xf32>
    %89 = arith.addf %86, %88 : vector<2x128xf32>
    %90 = arith.negf %89 : vector<2x128xf32>
    %91 = math.exp %90 : vector<2x128xf32>
    %cst_18 = arith.constant 1.000000e+00 : f32
    %92 = vector.broadcast %cst_18 : f32 to vector<2x128xf32>
    %93 = arith.addf %92, %91 : vector<2x128xf32>
    %94 = arith.divf %92, %93 : vector<2x128xf32>
    %95 = math.tanh %89 : vector<2x128xf32>
    %96 = vector.extract_strided_slice %94 {offsets = [0, 0], sizes = [2, 32], strides = [1, 1]} : vector<2x128xf32> to vector<2x32xf32>
    %97 = vector.extract_strided_slice %94 {offsets = [0, 32], sizes = [2, 32], strides = [1, 1]} : vector<2x128xf32> to vector<2x32xf32>
    %98 = vector.extract_strided_slice %94 {offsets = [0, 96], sizes = [2, 32], strides = [1, 1]} : vector<2x128xf32> to vector<2x32xf32>
    %99 = vector.extract_strided_slice %95 {offsets = [0, 64], sizes = [2, 32], strides = [1, 1]} : vector<2x128xf32> to vector<2x32xf32>
    %100 = arith.mulf %97, %83 : vector<2x32xf32>
    %101 = arith.mulf %96, %99 : vector<2x32xf32>
    %102 = arith.addf %100, %101 : vector<2x32xf32>
    %103 = math.tanh %102 : vector<2x32xf32>
    %104 = arith.mulf %98, %103 : vector<2x32xf32>
    %105 = vector.extract_strided_slice %6 {offsets = [10, 0], sizes = [2, 128], strides = [1, 1]} : vector<16x128xf32> to vector<2x128xf32>
    %106 = arith.truncf %104 : vector<2x32xf32> to vector<2x32xbf16>
    %cst_19 = arith.constant dense<0.000000e+00> : vector<2x128xf32>
    %107 = tpu.matmul %106, %7, %cst_19 {dimension_numbers = #tpu.dot_dimension_numbers<[1], [0], [0], [1], [0, 0, 1, 1], [], []>} : vector<2x32xbf16>, vector<32x128xbf16>, vector<2x128xf32> -> vector<2x128xf32>
    %108 = arith.addf %105, %107 : vector<2x128xf32>
    %109 = arith.negf %108 : vector<2x128xf32>
    %110 = math.exp %109 : vector<2x128xf32>
    %cst_20 = arith.constant 1.000000e+00 : f32
    %111 = vector.broadcast %cst_20 : f32 to vector<2x128xf32>
    %112 = arith.addf %111, %110 : vector<2x128xf32>
    %113 = arith.divf %111, %112 : vector<2x128xf32>
    %114 = math.tanh %108 : vector<2x128xf32>
    %115 = vector.extract_strided_slice %113 {offsets = [0, 0], sizes = [2, 32], strides = [1, 1]} : vector<2x128xf32> to vector<2x32xf32>
    %116 = vector.extract_strided_slice %113 {offsets = [0, 32], sizes = [2, 32], strides = [1, 1]} : vector<2x128xf32> to vector<2x32xf32>
    %117 = vector.extract_strided_slice %113 {offsets = [0, 96], sizes = [2, 32], strides = [1, 1]} : vector<2x128xf32> to vector<2x32xf32>
    %118 = vector.extract_strided_slice %114 {offsets = [0, 64], sizes = [2, 32], strides = [1, 1]} : vector<2x128xf32> to vector<2x32xf32>
    %119 = arith.mulf %116, %102 : vector<2x32xf32>
    %120 = arith.mulf %115, %118 : vector<2x32xf32>
    %121 = arith.addf %119, %120 : vector<2x32xf32>
    %122 = math.tanh %121 : vector<2x32xf32>
    %123 = arith.mulf %117, %122 : vector<2x32xf32>
    %124 = vector.extract_strided_slice %6 {offsets = [12, 0], sizes = [2, 128], strides = [1, 1]} : vector<16x128xf32> to vector<2x128xf32>
    %125 = arith.truncf %123 : vector<2x32xf32> to vector<2x32xbf16>
    %cst_21 = arith.constant dense<0.000000e+00> : vector<2x128xf32>
    %126 = tpu.matmul %125, %7, %cst_21 {dimension_numbers = #tpu.dot_dimension_numbers<[1], [0], [0], [1], [0, 0, 1, 1], [], []>} : vector<2x32xbf16>, vector<32x128xbf16>, vector<2x128xf32> -> vector<2x128xf32>
    %127 = arith.addf %124, %126 : vector<2x128xf32>
    %128 = arith.negf %127 : vector<2x128xf32>
    %129 = math.exp %128 : vector<2x128xf32>
    %cst_22 = arith.constant 1.000000e+00 : f32
    %130 = vector.broadcast %cst_22 : f32 to vector<2x128xf32>
    %131 = arith.addf %130, %129 : vector<2x128xf32>
    %132 = arith.divf %130, %131 : vector<2x128xf32>
    %133 = math.tanh %127 : vector<2x128xf32>
    %134 = vector.extract_strided_slice %132 {offsets = [0, 0], sizes = [2, 32], strides = [1, 1]} : vector<2x128xf32> to vector<2x32xf32>
    %135 = vector.extract_strided_slice %132 {offsets = [0, 32], sizes = [2, 32], strides = [1, 1]} : vector<2x128xf32> to vector<2x32xf32>
    %136 = vector.extract_strided_slice %132 {offsets = [0, 96], sizes = [2, 32], strides = [1, 1]} : vector<2x128xf32> to vector<2x32xf32>
    %137 = vector.extract_strided_slice %133 {offsets = [0, 64], sizes = [2, 32], strides = [1, 1]} : vector<2x128xf32> to vector<2x32xf32>
    %138 = arith.mulf %135, %121 : vector<2x32xf32>
    %139 = arith.mulf %134, %137 : vector<2x32xf32>
    %140 = arith.addf %138, %139 : vector<2x32xf32>
    %141 = math.tanh %140 : vector<2x32xf32>
    %142 = arith.mulf %136, %141 : vector<2x32xf32>
    %143 = vector.extract_strided_slice %6 {offsets = [14, 0], sizes = [2, 128], strides = [1, 1]} : vector<16x128xf32> to vector<2x128xf32>
    %144 = arith.truncf %142 : vector<2x32xf32> to vector<2x32xbf16>
    %cst_23 = arith.constant dense<0.000000e+00> : vector<2x128xf32>
    %145 = tpu.matmul %144, %7, %cst_23 {dimension_numbers = #tpu.dot_dimension_numbers<[1], [0], [0], [1], [0, 0, 1, 1], [], []>} : vector<2x32xbf16>, vector<32x128xbf16>, vector<2x128xf32> -> vector<2x128xf32>
    %146 = arith.addf %143, %145 : vector<2x128xf32>
    %147 = arith.negf %146 : vector<2x128xf32>
    %148 = math.exp %147 : vector<2x128xf32>
    %cst_24 = arith.constant 1.000000e+00 : f32
    %149 = vector.broadcast %cst_24 : f32 to vector<2x128xf32>
    %150 = arith.addf %149, %148 : vector<2x128xf32>
    %151 = arith.divf %149, %150 : vector<2x128xf32>
    %152 = math.tanh %146 : vector<2x128xf32>
    %153 = vector.extract_strided_slice %151 {offsets = [0, 0], sizes = [2, 32], strides = [1, 1]} : vector<2x128xf32> to vector<2x32xf32>
    %154 = vector.extract_strided_slice %151 {offsets = [0, 32], sizes = [2, 32], strides = [1, 1]} : vector<2x128xf32> to vector<2x32xf32>
    %155 = vector.extract_strided_slice %151 {offsets = [0, 96], sizes = [2, 32], strides = [1, 1]} : vector<2x128xf32> to vector<2x32xf32>
    %156 = vector.extract_strided_slice %152 {offsets = [0, 64], sizes = [2, 32], strides = [1, 1]} : vector<2x128xf32> to vector<2x32xf32>
    %157 = arith.mulf %154, %140 : vector<2x32xf32>
    %158 = arith.mulf %153, %156 : vector<2x32xf32>
    %159 = arith.addf %157, %158 : vector<2x32xf32>
    %160 = math.tanh %159 : vector<2x32xf32>
    %161 = arith.mulf %155, %160 : vector<2x32xf32>
    %c0_25 = arith.constant 0 : index
    %c0_26 = arith.constant 0 : index
    %162 = vector.load %arg1[%c0_25, %c0_26] : memref<8x11xf32, #tpu.memory_space<vmem>>, vector<8x11xf32>
    %163 = arith.truncf %162 : vector<8x11xf32> to vector<8x11xbf16>
    %c0_27 = arith.constant 0 : index
    %c0_28 = arith.constant 0 : index
    %164 = vector.load %arg7[%c0_27, %c0_28] : memref<11x128xbf16, #tpu.memory_space<vmem>>, vector<11x128xbf16>
    %cst_29 = arith.constant dense<0.000000e+00> : vector<8x128xf32>
    %165 = tpu.matmul %163, %164, %cst_29 {dimension_numbers = #tpu.dot_dimension_numbers<[1], [0], [0], [1], [0, 0, 1, 1], [], []>} : vector<8x11xbf16>, vector<11x128xbf16>, vector<8x128xf32> -> vector<8x128xf32>
    %c0_30 = arith.constant 0 : index
    %c0_31 = arith.constant 0 : index
    %166 = vector.load %arg10[%c0_30, %c0_31] : memref<1x128xf32, #tpu.memory_space<vmem>>, vector<1x128xf32>
    %167 = vector.broadcast %166 : vector<1x128xf32> to vector<8x128xf32>
    %168 = arith.addf %165, %167 : vector<8x128xf32>
    %c0_32 = arith.constant 0 : index
    %c0_33 = arith.constant 0 : index
    %169 = vector.load %arg3[%c0_32, %c0_33] : memref<2x7xf32, #tpu.memory_space<vmem>>, vector<2x7xf32>
    %170 = arith.truncf %169 : vector<2x7xf32> to vector<2x7xbf16>
    %c0_34 = arith.constant 0 : index
    %c0_35 = arith.constant 0 : index
    %171 = vector.load %arg11[%c0_34, %c0_35] : memref<7x128xbf16, #tpu.memory_space<vmem>>, vector<7x128xbf16>
    %cst_36 = arith.constant dense<0.000000e+00> : vector<2x128xf32>
    %172 = tpu.matmul %170, %171, %cst_36 {dimension_numbers = #tpu.dot_dimension_numbers<[1], [0], [0], [1], [0, 0, 1, 1], [], []>} : vector<2x7xbf16>, vector<7x128xbf16>, vector<2x128xf32> -> vector<2x128xf32>
    %c0_37 = arith.constant 0 : index
    %c0_38 = arith.constant 0 : index
    %173 = vector.load %arg13[%c0_37, %c0_38] : memref<1x128xf32, #tpu.memory_space<vmem>>, vector<1x128xf32>
    %174 = vector.broadcast %173 : vector<1x128xf32> to vector<2x128xf32>
    %175 = arith.addf %172, %174 : vector<2x128xf32>
    %c0_39 = arith.constant 0 : index
    %c0_40 = arith.constant 0 : index
    %176 = vector.load %arg9[%c0_39, %c0_40] : memref<32x128xbf16, #tpu.memory_space<vmem>>, vector<32x128xbf16>
    %c0_41 = arith.constant 0 : index
    %c0_42 = arith.constant 0 : index
    %177 = vector.load %arg8[%c0_41, %c0_42] : memref<1x128xf32, #tpu.memory_space<vmem>>, vector<1x128xf32>
    %c0_43 = arith.constant 0 : index
    %c0_44 = arith.constant 0 : index
    %178 = vector.load %arg12[%c0_43, %c0_44] : memref<32x128xbf16, #tpu.memory_space<vmem>>, vector<32x128xbf16>
    %c0_45 = arith.constant 0 : index
    %c0_46 = arith.constant 0 : index
    %179 = vector.load %arg14[%c0_45, %c0_46] : memref<128x64xbf16, #tpu.memory_space<vmem>>, vector<128x64xbf16>
    %c0_47 = arith.constant 0 : index
    %c0_48 = arith.constant 0 : index
    %180 = vector.load %arg16[%c0_47, %c0_48] : memref<64x32xbf16, #tpu.memory_space<vmem>>, vector<64x32xbf16>
    %c0_49 = arith.constant 0 : index
    %c0_50 = arith.constant 0 : index
    %181 = vector.load %arg18[%c0_49, %c0_50] : memref<32x1xf32, #tpu.memory_space<vmem>>, vector<32x1xf32>
    %c0_51 = arith.constant 0 : index
    %c0_52 = arith.constant 0 : index
    %182 = vector.load %arg15[%c0_51, %c0_52] : memref<1x64xf32, #tpu.memory_space<vmem>>, vector<1x64xf32>
    %183 = vector.shape_cast %182 : vector<1x64xf32> to vector<1x64xf32>
    %184 = vector.broadcast %183 : vector<1x64xf32> to vector<2x64xf32>
    %c0_53 = arith.constant 0 : index
    %c0_54 = arith.constant 0 : index
    %185 = vector.load %arg17[%c0_53, %c0_54] : memref<1x32xf32, #tpu.memory_space<vmem>>, vector<1x32xf32>
    %186 = vector.shape_cast %185 : vector<1x32xf32> to vector<1x32xf32>
    %187 = vector.broadcast %186 : vector<1x32xf32> to vector<2x32xf32>
    %c0_55 = arith.constant 0 : index
    %c0_56 = arith.constant 0 : index
    %188 = vector.load %arg19[%c0_55, %c0_56] : memref<1x1xf32, #tpu.memory_space<vmem>>, vector<1x1xf32>
    %189 = vector.shape_cast %188 : vector<1x1xf32> to vector<1x1xf32>
    %190 = vector.broadcast %189 : vector<1x1xf32> to vector<2x1xf32>
    %c0_57 = arith.constant 0 : index
    %c0_58 = arith.constant 0 : index
    %191 = vector.load %arg2[%c0_57, %c0_58] : memref<2x1xf32, #tpu.memory_space<vmem>>, vector<2x1xf32>
    %192 = vector.extract_strided_slice %168 {offsets = [0, 0], sizes = [2, 128], strides = [1, 1]} : vector<8x128xf32> to vector<2x128xf32>
    %193 = vector.broadcast %191 : vector<2x1xf32> to vector<2x128xf32>
    %194 = vector.broadcast %177 : vector<1x128xf32> to vector<2x128xf32>
    %195 = arith.mulf %193, %194 : vector<2x128xf32>
    %196 = arith.addf %192, %195 : vector<2x128xf32>
    %197 = arith.truncf %161 : vector<2x32xf32> to vector<2x32xbf16>
    %cst_59 = arith.constant dense<0.000000e+00> : vector<2x128xf32>
    %198 = tpu.matmul %197, %176, %cst_59 {dimension_numbers = #tpu.dot_dimension_numbers<[1], [0], [0], [1], [0, 0, 1, 1], [], []>} : vector<2x32xbf16>, vector<32x128xbf16>, vector<2x128xf32> -> vector<2x128xf32>
    %199 = arith.addf %196, %198 : vector<2x128xf32>
    %200 = arith.negf %199 : vector<2x128xf32>
    %201 = math.exp %200 : vector<2x128xf32>
    %cst_60 = arith.constant 1.000000e+00 : f32
    %202 = vector.broadcast %cst_60 : f32 to vector<2x128xf32>
    %203 = arith.addf %202, %201 : vector<2x128xf32>
    %204 = arith.divf %202, %203 : vector<2x128xf32>
    %205 = math.tanh %199 : vector<2x128xf32>
    %206 = vector.extract_strided_slice %204 {offsets = [0, 0], sizes = [2, 32], strides = [1, 1]} : vector<2x128xf32> to vector<2x32xf32>
    %207 = vector.extract_strided_slice %204 {offsets = [0, 32], sizes = [2, 32], strides = [1, 1]} : vector<2x128xf32> to vector<2x32xf32>
    %208 = vector.extract_strided_slice %204 {offsets = [0, 96], sizes = [2, 32], strides = [1, 1]} : vector<2x128xf32> to vector<2x32xf32>
    %209 = vector.extract_strided_slice %205 {offsets = [0, 64], sizes = [2, 32], strides = [1, 1]} : vector<2x128xf32> to vector<2x32xf32>
    %210 = arith.mulf %207, %159 : vector<2x32xf32>
    %211 = arith.mulf %206, %209 : vector<2x32xf32>
    %212 = arith.addf %210, %211 : vector<2x32xf32>
    %213 = math.tanh %212 : vector<2x32xf32>
    %214 = arith.mulf %208, %213 : vector<2x32xf32>
    %215 = arith.truncf %214 : vector<2x32xf32> to vector<2x32xbf16>
    %cst_61 = arith.constant dense<0.000000e+00> : vector<2x128xf32>
    %216 = tpu.matmul %215, %178, %cst_61 {dimension_numbers = #tpu.dot_dimension_numbers<[1], [0], [0], [1], [0, 0, 1, 1], [], []>} : vector<2x32xbf16>, vector<32x128xbf16>, vector<2x128xf32> -> vector<2x128xf32>
    %217 = arith.addf %175, %216 : vector<2x128xf32>
    %cst_62 = arith.constant 0.000000e+00 : f32
    %218 = vector.broadcast %cst_62 : f32 to vector<2x128xf32>
    %219 = arith.maximumf %217, %218 : vector<2x128xf32>
    %220 = arith.truncf %219 : vector<2x128xf32> to vector<2x128xbf16>
    %cst_63 = arith.constant dense<0.000000e+00> : vector<2x64xf32>
    %221 = tpu.matmul %220, %179, %cst_63 {dimension_numbers = #tpu.dot_dimension_numbers<[1], [0], [0], [1], [0, 0, 1, 1], [], []>} : vector<2x128xbf16>, vector<128x64xbf16>, vector<2x64xf32> -> vector<2x64xf32>
    %222 = arith.addf %221, %184 : vector<2x64xf32>
    %cst_64 = arith.constant 0.000000e+00 : f32
    %223 = vector.broadcast %cst_64 : f32 to vector<2x64xf32>
    %224 = arith.maximumf %222, %223 : vector<2x64xf32>
    %225 = arith.truncf %224 : vector<2x64xf32> to vector<2x64xbf16>
    %cst_65 = arith.constant dense<0.000000e+00> : vector<2x32xf32>
    %226 = tpu.matmul %225, %180, %cst_65 {dimension_numbers = #tpu.dot_dimension_numbers<[1], [0], [0], [1], [0, 0, 1, 1], [], []>} : vector<2x64xbf16>, vector<64x32xbf16>, vector<2x32xf32> -> vector<2x32xf32>
    %227 = arith.addf %226, %187 : vector<2x32xf32>
    %cst_66 = arith.constant 0.000000e+00 : f32
    %228 = vector.broadcast %cst_66 : f32 to vector<2x32xf32>
    %229 = arith.maximumf %227, %228 : vector<2x32xf32>
    %cst_67 = arith.constant dense<0.000000e+00> : vector<2x1xf32>
    %230 = tpu.matmul %229, %181, %cst_67 {dimension_numbers = #tpu.dot_dimension_numbers<[1], [0], [0], [1], [0, 0, 1, 1], [], []>} : vector<2x32xf32>, vector<32x1xf32>, vector<2x1xf32> -> vector<2x1xf32>
    %231 = arith.addf %230, %190 : vector<2x1xf32>
    %cst_68 = arith.constant 0.000000e+00 : f32
    %232 = vector.broadcast %cst_68 : f32 to vector<2x1xf32>
    %233 = arith.maximumf %231, %232 : vector<2x1xf32>
    %234 = vector.extract_strided_slice %168 {offsets = [2, 0], sizes = [2, 128], strides = [1, 1]} : vector<8x128xf32> to vector<2x128xf32>
    %235 = vector.broadcast %233 : vector<2x1xf32> to vector<2x128xf32>
    %236 = vector.broadcast %177 : vector<1x128xf32> to vector<2x128xf32>
    %237 = arith.mulf %235, %236 : vector<2x128xf32>
    %238 = arith.addf %234, %237 : vector<2x128xf32>
    %239 = arith.truncf %214 : vector<2x32xf32> to vector<2x32xbf16>
    %cst_69 = arith.constant dense<0.000000e+00> : vector<2x128xf32>
    %240 = tpu.matmul %239, %176, %cst_69 {dimension_numbers = #tpu.dot_dimension_numbers<[1], [0], [0], [1], [0, 0, 1, 1], [], []>} : vector<2x32xbf16>, vector<32x128xbf16>, vector<2x128xf32> -> vector<2x128xf32>
    %241 = arith.addf %238, %240 : vector<2x128xf32>
    %242 = arith.negf %241 : vector<2x128xf32>
    %243 = math.exp %242 : vector<2x128xf32>
    %cst_70 = arith.constant 1.000000e+00 : f32
    %244 = vector.broadcast %cst_70 : f32 to vector<2x128xf32>
    %245 = arith.addf %244, %243 : vector<2x128xf32>
    %246 = arith.divf %244, %245 : vector<2x128xf32>
    %247 = math.tanh %241 : vector<2x128xf32>
    %248 = vector.extract_strided_slice %246 {offsets = [0, 0], sizes = [2, 32], strides = [1, 1]} : vector<2x128xf32> to vector<2x32xf32>
    %249 = vector.extract_strided_slice %246 {offsets = [0, 32], sizes = [2, 32], strides = [1, 1]} : vector<2x128xf32> to vector<2x32xf32>
    %250 = vector.extract_strided_slice %246 {offsets = [0, 96], sizes = [2, 32], strides = [1, 1]} : vector<2x128xf32> to vector<2x32xf32>
    %251 = vector.extract_strided_slice %247 {offsets = [0, 64], sizes = [2, 32], strides = [1, 1]} : vector<2x128xf32> to vector<2x32xf32>
    %252 = arith.mulf %249, %212 : vector<2x32xf32>
    %253 = arith.mulf %248, %251 : vector<2x32xf32>
    %254 = arith.addf %252, %253 : vector<2x32xf32>
    %255 = math.tanh %254 : vector<2x32xf32>
    %256 = arith.mulf %250, %255 : vector<2x32xf32>
    %257 = arith.truncf %256 : vector<2x32xf32> to vector<2x32xbf16>
    %cst_71 = arith.constant dense<0.000000e+00> : vector<2x128xf32>
    %258 = tpu.matmul %257, %178, %cst_71 {dimension_numbers = #tpu.dot_dimension_numbers<[1], [0], [0], [1], [0, 0, 1, 1], [], []>} : vector<2x32xbf16>, vector<32x128xbf16>, vector<2x128xf32> -> vector<2x128xf32>
    %259 = arith.addf %175, %258 : vector<2x128xf32>
    %cst_72 = arith.constant 0.000000e+00 : f32
    %260 = vector.broadcast %cst_72 : f32 to vector<2x128xf32>
    %261 = arith.maximumf %259, %260 : vector<2x128xf32>
    %262 = arith.truncf %261 : vector<2x128xf32> to vector<2x128xbf16>
    %cst_73 = arith.constant dense<0.000000e+00> : vector<2x64xf32>
    %263 = tpu.matmul %262, %179, %cst_73 {dimension_numbers = #tpu.dot_dimension_numbers<[1], [0], [0], [1], [0, 0, 1, 1], [], []>} : vector<2x128xbf16>, vector<128x64xbf16>, vector<2x64xf32> -> vector<2x64xf32>
    %264 = arith.addf %263, %184 : vector<2x64xf32>
    %cst_74 = arith.constant 0.000000e+00 : f32
    %265 = vector.broadcast %cst_74 : f32 to vector<2x64xf32>
    %266 = arith.maximumf %264, %265 : vector<2x64xf32>
    %267 = arith.truncf %266 : vector<2x64xf32> to vector<2x64xbf16>
    %cst_75 = arith.constant dense<0.000000e+00> : vector<2x32xf32>
    %268 = tpu.matmul %267, %180, %cst_75 {dimension_numbers = #tpu.dot_dimension_numbers<[1], [0], [0], [1], [0, 0, 1, 1], [], []>} : vector<2x64xbf16>, vector<64x32xbf16>, vector<2x32xf32> -> vector<2x32xf32>
    %269 = arith.addf %268, %187 : vector<2x32xf32>
    %cst_76 = arith.constant 0.000000e+00 : f32
    %270 = vector.broadcast %cst_76 : f32 to vector<2x32xf32>
    %271 = arith.maximumf %269, %270 : vector<2x32xf32>
    %cst_77 = arith.constant dense<0.000000e+00> : vector<2x1xf32>
    %272 = tpu.matmul %271, %181, %cst_77 {dimension_numbers = #tpu.dot_dimension_numbers<[1], [0], [0], [1], [0, 0, 1, 1], [], []>} : vector<2x32xf32>, vector<32x1xf32>, vector<2x1xf32> -> vector<2x1xf32>
    %273 = arith.addf %272, %190 : vector<2x1xf32>
    %cst_78 = arith.constant 0.000000e+00 : f32
    %274 = vector.broadcast %cst_78 : f32 to vector<2x1xf32>
    %275 = arith.maximumf %273, %274 : vector<2x1xf32>
    %276 = vector.extract_strided_slice %168 {offsets = [4, 0], sizes = [2, 128], strides = [1, 1]} : vector<8x128xf32> to vector<2x128xf32>
    %277 = vector.broadcast %275 : vector<2x1xf32> to vector<2x128xf32>
    %278 = vector.broadcast %177 : vector<1x128xf32> to vector<2x128xf32>
    %279 = arith.mulf %277, %278 : vector<2x128xf32>
    %280 = arith.addf %276, %279 : vector<2x128xf32>
    %281 = arith.truncf %256 : vector<2x32xf32> to vector<2x32xbf16>
    %cst_79 = arith.constant dense<0.000000e+00> : vector<2x128xf32>
    %282 = tpu.matmul %281, %176, %cst_79 {dimension_numbers = #tpu.dot_dimension_numbers<[1], [0], [0], [1], [0, 0, 1, 1], [], []>} : vector<2x32xbf16>, vector<32x128xbf16>, vector<2x128xf32> -> vector<2x128xf32>
    %283 = arith.addf %280, %282 : vector<2x128xf32>
    %284 = arith.negf %283 : vector<2x128xf32>
    %285 = math.exp %284 : vector<2x128xf32>
    %cst_80 = arith.constant 1.000000e+00 : f32
    %286 = vector.broadcast %cst_80 : f32 to vector<2x128xf32>
    %287 = arith.addf %286, %285 : vector<2x128xf32>
    %288 = arith.divf %286, %287 : vector<2x128xf32>
    %289 = math.tanh %283 : vector<2x128xf32>
    %290 = vector.extract_strided_slice %288 {offsets = [0, 0], sizes = [2, 32], strides = [1, 1]} : vector<2x128xf32> to vector<2x32xf32>
    %291 = vector.extract_strided_slice %288 {offsets = [0, 32], sizes = [2, 32], strides = [1, 1]} : vector<2x128xf32> to vector<2x32xf32>
    %292 = vector.extract_strided_slice %288 {offsets = [0, 96], sizes = [2, 32], strides = [1, 1]} : vector<2x128xf32> to vector<2x32xf32>
    %293 = vector.extract_strided_slice %289 {offsets = [0, 64], sizes = [2, 32], strides = [1, 1]} : vector<2x128xf32> to vector<2x32xf32>
    %294 = arith.mulf %291, %254 : vector<2x32xf32>
    %295 = arith.mulf %290, %293 : vector<2x32xf32>
    %296 = arith.addf %294, %295 : vector<2x32xf32>
    %297 = math.tanh %296 : vector<2x32xf32>
    %298 = arith.mulf %292, %297 : vector<2x32xf32>
    %299 = arith.truncf %298 : vector<2x32xf32> to vector<2x32xbf16>
    %cst_81 = arith.constant dense<0.000000e+00> : vector<2x128xf32>
    %300 = tpu.matmul %299, %178, %cst_81 {dimension_numbers = #tpu.dot_dimension_numbers<[1], [0], [0], [1], [0, 0, 1, 1], [], []>} : vector<2x32xbf16>, vector<32x128xbf16>, vector<2x128xf32> -> vector<2x128xf32>
    %301 = arith.addf %175, %300 : vector<2x128xf32>
    %cst_82 = arith.constant 0.000000e+00 : f32
    %302 = vector.broadcast %cst_82 : f32 to vector<2x128xf32>
    %303 = arith.maximumf %301, %302 : vector<2x128xf32>
    %304 = arith.truncf %303 : vector<2x128xf32> to vector<2x128xbf16>
    %cst_83 = arith.constant dense<0.000000e+00> : vector<2x64xf32>
    %305 = tpu.matmul %304, %179, %cst_83 {dimension_numbers = #tpu.dot_dimension_numbers<[1], [0], [0], [1], [0, 0, 1, 1], [], []>} : vector<2x128xbf16>, vector<128x64xbf16>, vector<2x64xf32> -> vector<2x64xf32>
    %306 = arith.addf %305, %184 : vector<2x64xf32>
    %cst_84 = arith.constant 0.000000e+00 : f32
    %307 = vector.broadcast %cst_84 : f32 to vector<2x64xf32>
    %308 = arith.maximumf %306, %307 : vector<2x64xf32>
    %309 = arith.truncf %308 : vector<2x64xf32> to vector<2x64xbf16>
    %cst_85 = arith.constant dense<0.000000e+00> : vector<2x32xf32>
    %310 = tpu.matmul %309, %180, %cst_85 {dimension_numbers = #tpu.dot_dimension_numbers<[1], [0], [0], [1], [0, 0, 1, 1], [], []>} : vector<2x64xbf16>, vector<64x32xbf16>, vector<2x32xf32> -> vector<2x32xf32>
    %311 = arith.addf %310, %187 : vector<2x32xf32>
    %cst_86 = arith.constant 0.000000e+00 : f32
    %312 = vector.broadcast %cst_86 : f32 to vector<2x32xf32>
    %313 = arith.maximumf %311, %312 : vector<2x32xf32>
    %cst_87 = arith.constant dense<0.000000e+00> : vector<2x1xf32>
    %314 = tpu.matmul %313, %181, %cst_87 {dimension_numbers = #tpu.dot_dimension_numbers<[1], [0], [0], [1], [0, 0, 1, 1], [], []>} : vector<2x32xf32>, vector<32x1xf32>, vector<2x1xf32> -> vector<2x1xf32>
    %315 = arith.addf %314, %190 : vector<2x1xf32>
    %cst_88 = arith.constant 0.000000e+00 : f32
    %316 = vector.broadcast %cst_88 : f32 to vector<2x1xf32>
    %317 = arith.maximumf %315, %316 : vector<2x1xf32>
    %318 = vector.extract_strided_slice %168 {offsets = [6, 0], sizes = [2, 128], strides = [1, 1]} : vector<8x128xf32> to vector<2x128xf32>
    %319 = vector.broadcast %317 : vector<2x1xf32> to vector<2x128xf32>
    %320 = vector.broadcast %177 : vector<1x128xf32> to vector<2x128xf32>
    %321 = arith.mulf %319, %320 : vector<2x128xf32>
    %322 = arith.addf %318, %321 : vector<2x128xf32>
    %323 = arith.truncf %298 : vector<2x32xf32> to vector<2x32xbf16>
    %cst_89 = arith.constant dense<0.000000e+00> : vector<2x128xf32>
    %324 = tpu.matmul %323, %176, %cst_89 {dimension_numbers = #tpu.dot_dimension_numbers<[1], [0], [0], [1], [0, 0, 1, 1], [], []>} : vector<2x32xbf16>, vector<32x128xbf16>, vector<2x128xf32> -> vector<2x128xf32>
    %325 = arith.addf %322, %324 : vector<2x128xf32>
    %326 = arith.negf %325 : vector<2x128xf32>
    %327 = math.exp %326 : vector<2x128xf32>
    %cst_90 = arith.constant 1.000000e+00 : f32
    %328 = vector.broadcast %cst_90 : f32 to vector<2x128xf32>
    %329 = arith.addf %328, %327 : vector<2x128xf32>
    %330 = arith.divf %328, %329 : vector<2x128xf32>
    %331 = math.tanh %325 : vector<2x128xf32>
    %332 = vector.extract_strided_slice %330 {offsets = [0, 0], sizes = [2, 32], strides = [1, 1]} : vector<2x128xf32> to vector<2x32xf32>
    %333 = vector.extract_strided_slice %330 {offsets = [0, 32], sizes = [2, 32], strides = [1, 1]} : vector<2x128xf32> to vector<2x32xf32>
    %334 = vector.extract_strided_slice %330 {offsets = [0, 96], sizes = [2, 32], strides = [1, 1]} : vector<2x128xf32> to vector<2x32xf32>
    %335 = vector.extract_strided_slice %331 {offsets = [0, 64], sizes = [2, 32], strides = [1, 1]} : vector<2x128xf32> to vector<2x32xf32>
    %336 = arith.mulf %333, %296 : vector<2x32xf32>
    %337 = arith.mulf %332, %335 : vector<2x32xf32>
    %338 = arith.addf %336, %337 : vector<2x32xf32>
    %339 = math.tanh %338 : vector<2x32xf32>
    %340 = arith.mulf %334, %339 : vector<2x32xf32>
    %341 = arith.truncf %340 : vector<2x32xf32> to vector<2x32xbf16>
    %cst_91 = arith.constant dense<0.000000e+00> : vector<2x128xf32>
    %342 = tpu.matmul %341, %178, %cst_91 {dimension_numbers = #tpu.dot_dimension_numbers<[1], [0], [0], [1], [0, 0, 1, 1], [], []>} : vector<2x32xbf16>, vector<32x128xbf16>, vector<2x128xf32> -> vector<2x128xf32>
    %343 = arith.addf %175, %342 : vector<2x128xf32>
    %cst_92 = arith.constant 0.000000e+00 : f32
    %344 = vector.broadcast %cst_92 : f32 to vector<2x128xf32>
    %345 = arith.maximumf %343, %344 : vector<2x128xf32>
    %346 = arith.truncf %345 : vector<2x128xf32> to vector<2x128xbf16>
    %cst_93 = arith.constant dense<0.000000e+00> : vector<2x64xf32>
    %347 = tpu.matmul %346, %179, %cst_93 {dimension_numbers = #tpu.dot_dimension_numbers<[1], [0], [0], [1], [0, 0, 1, 1], [], []>} : vector<2x128xbf16>, vector<128x64xbf16>, vector<2x64xf32> -> vector<2x64xf32>
    %348 = arith.addf %347, %184 : vector<2x64xf32>
    %cst_94 = arith.constant 0.000000e+00 : f32
    %349 = vector.broadcast %cst_94 : f32 to vector<2x64xf32>
    %350 = arith.maximumf %348, %349 : vector<2x64xf32>
    %351 = arith.truncf %350 : vector<2x64xf32> to vector<2x64xbf16>
    %cst_95 = arith.constant dense<0.000000e+00> : vector<2x32xf32>
    %352 = tpu.matmul %351, %180, %cst_95 {dimension_numbers = #tpu.dot_dimension_numbers<[1], [0], [0], [1], [0, 0, 1, 1], [], []>} : vector<2x64xbf16>, vector<64x32xbf16>, vector<2x32xf32> -> vector<2x32xf32>
    %353 = arith.addf %352, %187 : vector<2x32xf32>
    %cst_96 = arith.constant 0.000000e+00 : f32
    %354 = vector.broadcast %cst_96 : f32 to vector<2x32xf32>
    %355 = arith.maximumf %353, %354 : vector<2x32xf32>
    %cst_97 = arith.constant dense<0.000000e+00> : vector<2x1xf32>
    %356 = tpu.matmul %355, %181, %cst_97 {dimension_numbers = #tpu.dot_dimension_numbers<[1], [0], [0], [1], [0, 0, 1, 1], [], []>} : vector<2x32xf32>, vector<32x1xf32>, vector<2x1xf32> -> vector<2x1xf32>
    %357 = arith.addf %356, %190 : vector<2x1xf32>
    %cst_98 = arith.constant 0.000000e+00 : f32
    %358 = vector.broadcast %cst_98 : f32 to vector<2x1xf32>
    %359 = arith.maximumf %357, %358 : vector<2x1xf32>
    %cst_99 = arith.constant 0.000000e+00 : f32
    %360 = vector.broadcast %cst_99 : f32 to vector<2x124xf32>
    %361 = tpu.concatenate %233, %275, %317, %359, %360 in 1 : vector<2x1xf32>, vector<2x1xf32>, vector<2x1xf32>, vector<2x1xf32>, vector<2x124xf32> -> vector<2x128xf32>
    %c0_100 = arith.constant 0 : index
    %c0_101 = arith.constant 0 : index
    %362 = vector.load %arg20[%c0_100, %c0_101] : memref<2x128xf32, #tpu.memory_space<vmem>>, vector<2x128xf32>
    tpu.vector_store %arg20[%c0_100, %c0_101], %361 {strides = array<i32>} : memref<2x128xf32, #tpu.memory_space<vmem>>, vector<2x128xf32>,
    return
  }
}

</mosaic_0001>

<llo_original>
// kernel: tpu_custom_call.1
$region0: #{tpu_custom_call.1}
  #allocation0 [shape = 'u32[]', space=smem, size = 0x4, offset = 0x4, fixed_abs, tag = 'smem constant byte address 0x4 - core index']
  #allocation1 [shape = 'u32[72,128]{1,0:T(1,128)}', space=vmem, size = 0x9000, scoped, tag = 'internal scratch']
  #allocation2 [shape = 'f32[1,1]{1,0:T(1,128)S(1)}', space=vmem, size = 0x200, scoped, tag = 'scoped memory for tpu_custom_call.1']
  %s0 = inlined_call_operand.vmem [shape: f32[16,12], index: 0, kind: input, shape index: {}]
  %s1 = inlined_call_operand.vmem [shape: f32[8,11], index: 1, kind: input, shape index: {}]
  %s2 = inlined_call_operand.vmem [shape: f32[2,1], index: 2, kind: input, shape index: {}]
  %s3 = inlined_call_operand.vmem [shape: f32[2,7], index: 3, kind: input, shape index: {}]
  %s4 = inlined_call_operand.vmem [shape: bf16[12,128], index: 4, kind: input, shape index: {}]
  %s5 = inlined_call_operand.vmem [shape: bf16[32,128], index: 5, kind: input, shape index: {}]
  %s6 = inlined_call_operand.vmem [shape: f32[1,128], index: 6, kind: input, shape index: {}]
  %s7 = inlined_call_operand.vmem [shape: bf16[11,128], index: 7, kind: input, shape index: {}]
  %s8 = inlined_call_operand.vmem [shape: f32[1,128], index: 8, kind: input, shape index: {}]
  %s9 = inlined_call_operand.vmem [shape: bf16[32,128], index: 9, kind: input, shape index: {}]
  %s10 = inlined_call_operand.vmem [shape: f32[1,128], index: 10, kind: input, shape index: {}]
  %s11 = inlined_call_operand.vmem [shape: bf16[7,128], index: 11, kind: input, shape index: {}]
  %s12 = inlined_call_operand.vmem [shape: bf16[32,128], index: 12, kind: input, shape index: {}]
  %s13 = inlined_call_operand.vmem [shape: f32[1,128], index: 13, kind: input, shape index: {}]
  %s14 = inlined_call_operand.vmem [shape: bf16[128,64], index: 14, kind: input, shape index: {}]
  %s15 = inlined_call_operand.vmem [shape: f32[1,64], index: 15, kind: input, shape index: {}]
  %s16 = inlined_call_operand.vmem [shape: bf16[64,32], index: 16, kind: input, shape index: {}]
  %s17 = inlined_call_operand.vmem [shape: f32[1,32], index: 17, kind: input, shape index: {}]
  %s18 = inlined_call_operand.vmem [shape: f32[32,1], index: 18, kind: input, shape index: {}]
  %s19 = inlined_call_operand.<no memory space> [shape: f32[1,1], index: 19, kind: input, shape index: {}]
  %s20 = inlined_call_operand.hbm [shape: f32[2,128], index: 20, kind: output, shape index: {}]
  %s21 = sld [smem:[#allocation0]]
  $region90: #{tpu_custom_call.1} parent=0
    _
  %s23 = ssub.s32 1, %s21
  %s24 = scalar_select 0, %s23, %s21
  %v25 = vstv %s19
  %26 = vst [vmem:[#allocation2] sm:$0x1] %v25
  $region1: #{tpu_custom_call.1} parent=0
    #allocation3 [shape = 'u8[1024]{0}', space=vmem, size = 0x400, scoped, tag = 'output window, operand 0, single buffered']
    #allocation4 [shape = 's32[1]{0}', space=sflag, size = 0x4, scoped, tag = 'scoped memory for tpu_custom_call.1']
    %27 = vsyncpa [#allocation4], 0
    // Predicated region
    $region2: #{tpu_custom_call.1} parent=1 // pred_check
      _
    $region3: #{tpu_custom_call.1} parent=1 // pred_check_branch
      %29 = sbr.rel (0) target = $region5
    $region4: #{tpu_custom_call.1} parent=1 // pred_region
      _
    $region5: #{tpu_custom_call.1} parent=1 // pred_fallthru
      _
    // Predicated region
    $region6: #{tpu_custom_call.1} parent=1 // pred_check
      _
    $region7: #{tpu_custom_call.1} parent=1 // pred_check_branch
      %31 = sbr.rel (0) target = $region9
    $region8: #{tpu_custom_call.1} parent=1 // pred_region
      _
    $region9: #{tpu_custom_call.1} parent=1 // pred_fallthru
      _
    // Predicated region
    $region10: #{tpu_custom_call.1} parent=1 // pred_check
      _
    $region11: #{tpu_custom_call.1} parent=1 // pred_check_branch
      %33 = sbr.rel (0) target = $region13
    $region12: #{tpu_custom_call.1} parent=1 // pred_region
      _
    $region13: #{tpu_custom_call.1} parent=1 // pred_fallthru
      _
    // Predicated region
    $region14: #{tpu_custom_call.1} parent=1 // pred_check
      _
    $region15: #{tpu_custom_call.1} parent=1 // pred_check_branch
      %35 = sbr.rel (0) target = $region17
    $region16: #{tpu_custom_call.1} parent=1 // pred_region
      _
    $region17: #{tpu_custom_call.1} parent=1 // pred_fallthru
      _
    // Predicated region
    $region18: #{tpu_custom_call.1} parent=1 // pred_check
      _
    $region19: #{tpu_custom_call.1} parent=1 // pred_check_branch
      %37 = sbr.rel (0) target = $region21
    $region20: #{tpu_custom_call.1} parent=1 // pred_region
      _
    $region21: #{tpu_custom_call.1} parent=1 // pred_fallthru
      _
    // Predicated region
    $region22: #{tpu_custom_call.1} parent=1 // pred_check
      _
    $region23: #{tpu_custom_call.1} parent=1 // pred_check_branch
      %39 = sbr.rel (0) target = $region25
    $region24: #{tpu_custom_call.1} parent=1 // pred_region
      _
    $region25: #{tpu_custom_call.1} parent=1 // pred_fallthru
      _
    // Predicated region
    $region26: #{tpu_custom_call.1} parent=1 // pred_check
      _
    $region27: #{tpu_custom_call.1} parent=1 // pred_check_branch
      %41 = sbr.rel (0) target = $region29
    $region28: #{tpu_custom_call.1} parent=1 // pred_region
      _
    $region29: #{tpu_custom_call.1} parent=1 // pred_fallthru
      _
    // Predicated region
    $region30: #{tpu_custom_call.1} parent=1 // pred_check
      _
    $region31: #{tpu_custom_call.1} parent=1 // pred_check_branch
      %43 = sbr.rel (0) target = $region33
    $region32: #{tpu_custom_call.1} parent=1 // pred_region
      _
    $region33: #{tpu_custom_call.1} parent=1 // pred_fallthru
      _
    // Predicated region
    $region34: #{tpu_custom_call.1} parent=1 // pred_check
      _
    $region35: #{tpu_custom_call.1} parent=1 // pred_check_branch
      %45 = sbr.rel (0) target = $region37
    $region36: #{tpu_custom_call.1} parent=1 // pred_region
      _
    $region37: #{tpu_custom_call.1} parent=1 // pred_fallthru
      _
    // Predicated region
    $region38: #{tpu_custom_call.1} parent=1 // pred_check
      _
    $region39: #{tpu_custom_call.1} parent=1 // pred_check_branch
      %47 = sbr.rel (0) target = $region41
    $region40: #{tpu_custom_call.1} parent=1 // pred_region
      _
    $region41: #{tpu_custom_call.1} parent=1 // pred_fallthru
      _
    // Predicated region
    $region42: #{tpu_custom_call.1} parent=1 // pred_check
      _
    $region43: #{tpu_custom_call.1} parent=1 // pred_check_branch
      %49 = sbr.rel (0) target = $region45
    $region44: #{tpu_custom_call.1} parent=1 // pred_region
      _
    $region45: #{tpu_custom_call.1} parent=1 // pred_fallthru
      _
    // Predicated region
    $region46: #{tpu_custom_call.1} parent=1 // pred_check
      _
    $region47: #{tpu_custom_call.1} parent=1 // pred_check_branch
      %51 = sbr.rel (0) target = $region49
    $region48: #{tpu_custom_call.1} parent=1 // pred_region
      _
    $region49: #{tpu_custom_call.1} parent=1 // pred_fallthru
      _
    // Predicated region
    $region50: #{tpu_custom_call.1} parent=1 // pred_check
      _
    $region51: #{tpu_custom_call.1} parent=1 // pred_check_branch
      %53 = sbr.rel (0) target = $region53
    $region52: #{tpu_custom_call.1} parent=1 // pred_region
      _
    $region53: #{tpu_custom_call.1} parent=1 // pred_fallthru
      _
    // Predicated region
    $region54: #{tpu_custom_call.1} parent=1 // pred_check
      _
    $region55: #{tpu_custom_call.1} parent=1 // pred_check_branch
      %55 = sbr.rel (0) target = $region57
    $region56: #{tpu_custom_call.1} parent=1 // pred_region
      _
    $region57: #{tpu_custom_call.1} parent=1 // pred_fallthru
      _
    // Predicated region
    $region58: #{tpu_custom_call.1} parent=1 // pred_check
      _
    $region59: #{tpu_custom_call.1} parent=1 // pred_check_branch
      %57 = sbr.rel (0) target = $region61
    $region60: #{tpu_custom_call.1} parent=1 // pred_region
      _
    $region61: #{tpu_custom_call.1} parent=1 // pred_fallthru
      _
    // Predicated region
    $region62: #{tpu_custom_call.1} parent=1 // pred_check
      _
    $region63: #{tpu_custom_call.1} parent=1 // pred_check_branch
      %59 = sbr.rel (0) target = $region65
    $region64: #{tpu_custom_call.1} parent=1 // pred_region
      _
    $region65: #{tpu_custom_call.1} parent=1 // pred_fallthru
      _
    // Predicated region
    $region66: #{tpu_custom_call.1} parent=1 // pred_check
      _
    $region67: #{tpu_custom_call.1} parent=1 // pred_check_branch
      %61 = sbr.rel (0) target = $region69
    $region68: #{tpu_custom_call.1} parent=1 // pred_region
      _
    $region69: #{tpu_custom_call.1} parent=1 // pred_fallthru
      _
    // Predicated region
    $region70: #{tpu_custom_call.1} parent=1 // pred_check
      _
    $region71: #{tpu_custom_call.1} parent=1 // pred_check_branch
      %63 = sbr.rel (0) target = $region73
    $region72: #{tpu_custom_call.1} parent=1 // pred_region
      _
    $region73: #{tpu_custom_call.1} parent=1 // pred_fallthru
      _
    // Predicated region
    $region74: #{tpu_custom_call.1} parent=1 // pred_check
      _
    $region75: #{tpu_custom_call.1} parent=1 // pred_check_branch
      %65 = sbr.rel (0) target = $region77
    $region76: #{tpu_custom_call.1} parent=1 // pred_region
      _
    $region77: #{tpu_custom_call.1} parent=1 // pred_fallthru
      _
    // Predicated region
    $region78: #{tpu_custom_call.1} parent=1 // pred_check
      _
    $region79: #{tpu_custom_call.1} parent=1 // pred_check_branch
      %67 = sbr.rel (0) target = $region81
    $region80: #{tpu_custom_call.1} parent=1 // pred_region
      _
    $region81: #{tpu_custom_call.1} parent=1 // pred_fallthru
      _
    %v69 = vld [vmem:[%s0] sm:$0xff]
    %v70 = vld [vmem:[%s0 + $0x8] sm:$0xff]
    %v71 = vpack.c.bf16 %v70, %v69
    %v72 = vld [vmem:[%s4] sm:$0xf]
    %v73 = vld [vmem:[%s4 + $0x4] sm:$0x3]
    %v74 = vld [vmem:[%s6] sm:$0x1]
    %v76 = vperm.slane %v74, 0
    %v80 = vunpack.c.l.b16 %v72
    %v81 = vunpack.c.l.b16 %v73
    %v82 = vpack.c.b16 %v81, %v80
    %vm83 = vcmask 97280
    %v85 = vsel %vm83, %v71, 0
    %vm87 = vcmask 1045504
    %v89 = vsel %vm87, %v82, 0
    %91 = vmatpush.bf16.msra.mxu0 0
    %92 = vmatpush.bf16.msra.mxu0 0
    %93 = vmatpush.bf16.msra.mxu0 0
    %94 = vmatpush.bf16.msra.mxu0 0
    %95 = vmatpush.bf16.msra.mxu0 0
    %96 = vmatpush.bf16.msra.mxu0 0
    %97 = vmatpush.bf16.msra.mxu0 0
    %98 = vmatpush.bf16.msra.mxu0 %v89
    %99 = vmatmul.bf16.gmra.mxu0 %v85
    %v100 = vpop.f32.mrf.mxu0
    %v101 = vadd.f32 %v76, %v100
    %v102 = vpop.f32.mrf.mxu0
    %v103 = vadd.f32 %v76, %v102
    %104 = vdwg.mxu0
    %v105 = vld [vmem:[%s5] sm:$0xf]
    %v106 = vld [vmem:[%s5 + $0x4] sm:$0xf]
    %v107 = vld [vmem:[%s5 + $0x8] sm:$0xf]
    %v108 = vld [vmem:[%s5 + $0xc] sm:$0xf]
    %v113 = vunpack.c.l.b16 %v105
    %v114 = vunpack.c.l.b16 %v106
    %v115 = vunpack.c.l.b16 %v107
    %v116 = vunpack.c.l.b16 %v108
    %v117 = vpack.c.b16 %v114, %v113
    %v118 = vpack.c.b16 %v116, %v115
    %vm121 = vcmask 261120
    %v123 = vsel %vm121, 0, 0
    %125 = vmatpush.bf16.msra.mxu0 0
    %126 = vmatpush.bf16.msra.mxu0 0
    %127 = vmatpush.bf16.msra.mxu0 0
    %128 = vmatpush.bf16.msra.mxu0 0
    %129 = vmatpush.bf16.msra.mxu0 0
    %130 = vmatpush.bf16.msra.mxu0 0
    %131 = vmatpush.bf16.msra.mxu0 %v118
    %132 = vmatpush.bf16.msra.mxu0 %v117
    %133 = vmatmul.bf16.gmra.mxu0 %v123
    %v134 = vpop.f32.mrf.mxu0
    %v135 = vadd.f32 0.0, %v134
    %v136 = vpop.f32.mrf.mxu0
    %137 = vdwg.mxu0
    %v138 = vadd.f32 %v101, %v135
    %v139 = vxor.u32 %v138, 2147483648
    %v140 = vmul.f32 %v139, 1.442695
    %v141 = vpow.pop %v140
    %v142 = vadd.f32 %v141, 1.0
    %v143 = vrcp.pop %v142
    %v144 = vmul.f32 %v142, %v143
    %v145 = vsub.f32 1.0, %v144
    %v146 = vmul.f32 %v143, %v145
    %v147 = vadd.f32 %v143, %v146
    %vm148 = vweird.f32 %v142
    %vm149 = vweird.f32 %v143
    %vm150 = vmor %vm148, %vm149
    %v151 = vsel %vm150, %v143, %v147
    %v152 = vand.u32 2147483647, %v142
    %vm153 = vcmp.eq.f32.partialorder %v152, 8.507059e+37
    %v154 = vand.u32 %v142, 2147483648
    %v155 = vor.u32 1.1754944e-38, %v154
    %v156 = vsel %vm153, %v155, %v151
    %v157 = vmul.f32 1.0, %v156
    %v158 = vtanh.pop %v138
    %v159 = vmul.f32 %v157, 0.0
    %161 = vrot.lane.b32.xlu0 %v158, 64
    %v162 = vpop.permute.xlu0 %161
    %v164 = vmul.f32 %v157, %v162
    %166 = vrot.lane.b32.xlu0 %v164, 32
    %v167 = vpop.permute.xlu0 %166
    %v169 = vadd.f32 %v159, %v167
    %v170 = vtanh.pop %v169
    %172 = vrot.lane.b32.xlu0 %v170, 64
    %v173 = vpop.permute.xlu0 %172
    %v175 = vmul.f32 %v157, %v173
    %v176 = vpack.c.bf16 %v175, %v175
    %178 = vrot.lane.b32.xlu0 %v176, 32
    %v179 = vpop.permute.xlu0 %178
    %v181 = vsel %vm121, %v179, 0
    %183 = vmatpush.bf16.msra.mxu0 0
    %184 = vmatpush.bf16.msra.mxu0 0
    %185 = vmatpush.bf16.msra.mxu0 0
    %186 = vmatpush.bf16.msra.mxu0 0
    %187 = vmatpush.bf16.msra.mxu0 0
    %188 = vmatpush.bf16.msra.mxu0 0
    %189 = vmatpush.bf16.msra.mxu0 %v118
    %190 = vmatpush.bf16.msra.mxu0 %v117
    %191 = vmatmul.bf16.gmra.mxu0 %v181
    %v192 = vpop.f32.mrf.mxu0
    %v193 = vadd.f32 0.0, %v192
    %v194 = vpop.f32.mrf.mxu0
    %195 = vdwg.mxu0
    %v197 = vrot.slane %v193, 6
    %v199 = vadd.f32 %v101, %v197
    %v200 = vxor.u32 %v199, 2147483648
    %v201 = vmul.f32 %v200, 1.442695
    %v202 = vpow.pop %v201
    %v203 = vadd.f32 %v202, 1.0
    %v204 = vrcp.pop %v203
    %v205 = vmul.f32 %v203, %v204
    %v206 = vsub.f32 1.0, %v205
    %v207 = vmul.f32 %v204, %v206
    %v208 = vadd.f32 %v204, %v207
    %vm209 = vweird.f32 %v203
    %vm210 = vweird.f32 %v204
    %vm211 = vmor %vm209, %vm210
    %v212 = vsel %vm211, %v204, %v208
    %v213 = vand.u32 2147483647, %v203
    %vm214 = vcmp.eq.f32.partialorder %v213, 8.507059e+37
    %v215 = vand.u32 %v203, 2147483648
    %v216 = vor.u32 1.1754944e-38, %v215
    %v217 = vsel %vm214, %v216, %v212
    %v218 = vmul.f32 1.0, %v217
    %v219 = vtanh.pop %v199
    %v221 = vrot.slane %v169, 6
    %v223 = vmul.f32 %v218, %v221
    %225 = vrot.lane.b32.xlu0 %v219, 64
    %v226 = vpop.permute.xlu0 %225
    %v228 = vmul.f32 %v218, %v226
    %230 = vrot.lane.b32.xlu0 %v228, 32
    %v231 = vpop.permute.xlu0 %230
    %v233 = vadd.f32 %v223, %v231
    %v234 = vtanh.pop %v233
    %236 = vrot.lane.b32.xlu0 %v234, 64
    %v237 = vpop.permute.xlu0 %236
    %v239 = vmul.f32 %v218, %v237
    %v240 = vpack.c.bf16 %v239, %v239
    %v242 = vrot.slane %v240, 1
    %243 = vrot.lane.b32.xlu0 %v242, 32
    %v244 = vpop.permute.xlu0 %243
    %v246 = vsel %vm121, %v244, 0
    %248 = vmatpush.bf16.msra.mxu0 0
    %249 = vmatpush.bf16.msra.mxu0 0
    %250 = vmatpush.bf16.msra.mxu0 0
    %251 = vmatpush.bf16.msra.mxu0 0
    %252 = vmatpush.bf16.msra.mxu0 0
    %253 = vmatpush.bf16.msra.mxu0 0
    %254 = vmatpush.bf16.msra.mxu0 %v118
    %255 = vmatpush.bf16.msra.mxu0 %v117
    %256 = vmatmul.bf16.gmra.mxu0 %v246
    %v257 = vpop.f32.mrf.mxu0
    %v258 = vadd.f32 0.0, %v257
    %v259 = vpop.f32.mrf.mxu0
    %260 = vdwg.mxu0
    %v262 = vrot.slane %v258, 4
    %v264 = vadd.f32 %v101, %v262
    %v265 = vxor.u32 %v264, 2147483648
    %v266 = vmul.f32 %v265, 1.442695
    %v267 = vpow.pop %v266
    %v268 = vadd.f32 %v267, 1.0
    %v269 = vrcp.pop %v268
    %v270 = vmul.f32 %v268, %v269
    %v271 = vsub.f32 1.0, %v270
    %v272 = vmul.f32 %v269, %v271
    %v273 = vadd.f32 %v269, %v272
    %vm274 = vweird.f32 %v268
    %vm275 = vweird.f32 %v269
    %vm276 = vmor %vm274, %vm275
    %v277 = vsel %vm276, %v269, %v273
    %v278 = vand.u32 2147483647, %v268
    %vm279 = vcmp.eq.f32.partialorder %v278, 8.507059e+37
    %v280 = vand.u32 %v268, 2147483648
    %v281 = vor.u32 1.1754944e-38, %v280
    %v282 = vsel %vm279, %v281, %v277
    %v283 = vmul.f32 1.0, %v282
    %v284 = vtanh.pop %v264
    %v286 = vrot.slane %v233, 6
    %v288 = vmul.f32 %v283, %v286
    %290 = vrot.lane.b32.xlu0 %v284, 64
    %v291 = vpop.permute.xlu0 %290
    %v293 = vmul.f32 %v283, %v291
    %295 = vrot.lane.b32.xlu0 %v293, 32
    %v296 = vpop.permute.xlu0 %295
    %v298 = vadd.f32 %v288, %v296
    %v299 = vtanh.pop %v298
    %301 = vrot.lane.b32.xlu0 %v299, 64
    %v302 = vpop.permute.xlu0 %301
    %v304 = vmul.f32 %v283, %v302
    %v305 = vpack.c.bf16 %v304, %v304
    %v307 = vrot.slane %v305, 2
    %308 = vrot.lane.b32.xlu0 %v307, 32
    %v309 = vpop.permute.xlu0 %308
    %v311 = vsel %vm121, %v309, 0
    %313 = vmatpush.bf16.msra.mxu0 0
    %314 = vmatpush.bf16.msra.mxu0 0
    %315 = vmatpush.bf16.msra.mxu0 0
    %316 = vmatpush.bf16.msra.mxu0 0
    %317 = vmatpush.bf16.msra.mxu0 0
    %318 = vmatpush.bf16.msra.mxu0 0
    %319 = vmatpush.bf16.msra.mxu0 %v118
    %320 = vmatpush.bf16.msra.mxu0 %v117
    %321 = vmatmul.bf16.gmra.mxu0 %v311
    %v322 = vpop.f32.mrf.mxu0
    %v323 = vadd.f32 0.0, %v322
    %v324 = vpop.f32.mrf.mxu0
    %325 = vdwg.mxu0
    %v327 = vrot.slane %v323, 2
    %v329 = vadd.f32 %v101, %v327
    %v330 = vxor.u32 %v329, 2147483648
    %v331 = vmul.f32 %v330, 1.442695
    %v332 = vpow.pop %v331
    %v333 = vadd.f32 %v332, 1.0
    %v334 = vrcp.pop %v333
    %v335 = vmul.f32 %v333, %v334
    %v336 = vsub.f32 1.0, %v335
    %v337 = vmul.f32 %v334, %v336
    %v338 = vadd.f32 %v334, %v337
    %vm339 = vweird.f32 %v333
    %vm340 = vweird.f32 %v334
    %vm341 = vmor %vm339, %vm340
    %v342 = vsel %vm341, %v334, %v338
    %v343 = vand.u32 2147483647, %v333
    %vm344 = vcmp.eq.f32.partialorder %v343, 8.507059e+37
    %v345 = vand.u32 %v333, 2147483648
    %v346 = vor.u32 1.1754944e-38, %v345
    %v347 = vsel %vm344, %v346, %v342
    %v348 = vmul.f32 1.0, %v347
    %v349 = vtanh.pop %v329
    %v351 = vrot.slane %v298, 6
    %v353 = vmul.f32 %v348, %v351
    %355 = vrot.lane.b32.xlu0 %v349, 64
    %v356 = vpop.permute.xlu0 %355
    %v358 = vmul.f32 %v348, %v356
    %360 = vrot.lane.b32.xlu0 %v358, 32
    %v361 = vpop.permute.xlu0 %360
    %v363 = vadd.f32 %v353, %v361
    %v364 = vtanh.pop %v363
    %366 = vrot.lane.b32.xlu0 %v364, 64
    %v367 = vpop.permute.xlu0 %366
    %v369 = vmul.f32 %v348, %v367
    %v370 = vpack.c.bf16 %v369, %v369
    %v372 = vrot.slane %v370, 3
    %373 = vrot.lane.b32.xlu0 %v372, 32
    %v374 = vpop.permute.xlu0 %373
    %v376 = vsel %vm121, %v374, 0
    %378 = vmatpush.bf16.msra.mxu0 0
    %379 = vmatpush.bf16.msra.mxu0 0
    %380 = vmatpush.bf16.msra.mxu0 0
    %381 = vmatpush.bf16.msra.mxu0 0
    %382 = vmatpush.bf16.msra.mxu0 0
    %383 = vmatpush.bf16.msra.mxu0 0
    %384 = vmatpush.bf16.msra.mxu0 %v118
    %385 = vmatpush.bf16.msra.mxu0 %v117
    %386 = vmatmul.bf16.gmra.mxu0 %v376
    %v387 = vpop.f32.mrf.mxu0
    %v388 = vadd.f32 0.0, %v387
    %v389 = vpop.f32.mrf.mxu0
    %390 = vdwg.mxu0
    %v391 = vadd.f32 %v103, %v388
    %v392 = vxor.u32 %v391, 2147483648
    %v393 = vmul.f32 %v392, 1.442695
    %v394 = vpow.pop %v393
    %v395 = vadd.f32 %v394, 1.0
    %v396 = vrcp.pop %v395
    %v397 = vmul.f32 %v395, %v396
    %v398 = vsub.f32 1.0, %v397
    %v399 = vmul.f32 %v396, %v398
    %v400 = vadd.f32 %v396, %v399
    %vm401 = vweird.f32 %v395
    %vm402 = vweird.f32 %v396
    %vm403 = vmor %vm401, %vm402
    %v404 = vsel %vm403, %v396, %v400
    %v405 = vand.u32 2147483647, %v395
    %vm406 = vcmp.eq.f32.partialorder %v405, 8.507059e+37
    %v407 = vand.u32 %v395, 2147483648
    %v408 = vor.u32 1.1754944e-38, %v407
    %v409 = vsel %vm406, %v408, %v404
    %v410 = vmul.f32 1.0, %v409
    %v411 = vtanh.pop %v391
    %v413 = vrot.slane %v363, 6
    %v415 = vmul.f32 %v410, %v413
    %417 = vrot.lane.b32.xlu0 %v411, 64
    %v418 = vpop.permute.xlu0 %417
    %v420 = vmul.f32 %v410, %v418
    %422 = vrot.lane.b32.xlu0 %v420, 32
    %v423 = vpop.permute.xlu0 %422
    %v425 = vadd.f32 %v415, %v423
    %v426 = vtanh.pop %v425
    %428 = vrot.lane.b32.xlu0 %v426, 64
    %v429 = vpop.permute.xlu0 %428
    %v431 = vmul.f32 %v410, %v429
    %v432 = vpack.c.bf16 %v431, %v431
    %434 = vrot.lane.b32.xlu0 %v432, 32
    %v435 = vpop.permute.xlu0 %434
    %v437 = vsel %vm121, %v435, 0
    %439 = vmatpush.bf16.msra.mxu0 0
    %440 = vmatpush.bf16.msra.mxu0 0
    %441 = vmatpush.bf16.msra.mxu0 0
    %442 = vmatpush.bf16.msra.mxu0 0
    %443 = vmatpush.bf16.msra.mxu0 0
    %444 = vmatpush.bf16.msra.mxu0 0
    %445 = vmatpush.bf16.msra.mxu0 %v118
    %446 = vmatpush.bf16.msra.mxu0 %v117
    %447 = vmatmul.bf16.gmra.mxu0 %v437
    %v448 = vpop.f32.mrf.mxu0
    %v449 = vadd.f32 0.0, %v448
    %v450 = vpop.f32.mrf.mxu0
    %451 = vdwg.mxu0
    %v453 = vrot.slane %v449, 6
    %v455 = vadd.f32 %v103, %v453
    %v456 = vxor.u32 %v455, 2147483648
    %v457 = vmul.f32 %v456, 1.442695
    %v458 = vpow.pop %v457
    %v459 = vadd.f32 %v458, 1.0
    %v460 = vrcp.pop %v459
    %v461 = vmul.f32 %v459, %v460
    %v462 = vsub.f32 1.0, %v461
    %v463 = vmul.f32 %v460, %v462
    %v464 = vadd.f32 %v460, %v463
    %vm465 = vweird.f32 %v459
    %vm466 = vweird.f32 %v460
    %vm467 = vmor %vm465, %vm466
    %v468 = vsel %vm467, %v460, %v464
    %v469 = vand.u32 2147483647, %v459
    %vm470 = vcmp.eq.f32.partialorder %v469, 8.507059e+37
    %v471 = vand.u32 %v459, 2147483648
    %v472 = vor.u32 1.1754944e-38, %v471
    %v473 = vsel %vm470, %v472, %v468
    %v474 = vmul.f32 1.0, %v473
    %v475 = vtanh.pop %v455
    %v477 = vrot.slane %v425, 6
    %v479 = vmul.f32 %v474, %v477
    %481 = vrot.lane.b32.xlu0 %v475, 64
    %v482 = vpop.permute.xlu0 %481
    %v484 = vmul.f32 %v474, %v482
    %486 = vrot.lane.b32.xlu0 %v484, 32
    %v487 = vpop.permute.xlu0 %486
    %v489 = vadd.f32 %v479, %v487
    %v490 = vtanh.pop %v489
    %492 = vrot.lane.b32.xlu0 %v490, 64
    %v493 = vpop.permute.xlu0 %492
    %v495 = vmul.f32 %v474, %v493
    %v496 = vpack.c.bf16 %v495, %v495
    %v498 = vrot.slane %v496, 1
    %499 = vrot.lane.b32.xlu0 %v498, 32
    %v500 = vpop.permute.xlu0 %499
    %v502 = vsel %vm121, %v500, 0
    %504 = vmatpush.bf16.msra.mxu0 0
    %505 = vmatpush.bf16.msra.mxu0 0
    %506 = vmatpush.bf16.msra.mxu0 0
    %507 = vmatpush.bf16.msra.mxu0 0
    %508 = vmatpush.bf16.msra.mxu0 0
    %509 = vmatpush.bf16.msra.mxu0 0
    %510 = vmatpush.bf16.msra.mxu0 %v118
    %511 = vmatpush.bf16.msra.mxu0 %v117
    %512 = vmatmul.bf16.gmra.mxu0 %v502
    %v513 = vpop.f32.mrf.mxu0
    %v514 = vadd.f32 0.0, %v513
    %v515 = vpop.f32.mrf.mxu0
    %516 = vdwg.mxu0
    %v518 = vrot.slane %v514, 4
    %v520 = vadd.f32 %v103, %v518
    %v521 = vxor.u32 %v520, 2147483648
    %v522 = vmul.f32 %v521, 1.442695
    %v523 = vpow.pop %v522
    %v524 = vadd.f32 %v523, 1.0
    %v525 = vrcp.pop %v524
    %v526 = vmul.f32 %v524, %v525
    %v527 = vsub.f32 1.0, %v526
    %v528 = vmul.f32 %v525, %v527
    %v529 = vadd.f32 %v525, %v528
    %vm530 = vweird.f32 %v524
    %vm531 = vweird.f32 %v525
    %vm532 = vmor %vm530, %vm531
    %v533 = vsel %vm532, %v525, %v529
    %v534 = vand.u32 2147483647, %v524
    %vm535 = vcmp.eq.f32.partialorder %v534, 8.507059e+37
    %v536 = vand.u32 %v524, 2147483648
    %v537 = vor.u32 1.1754944e-38, %v536
    %v538 = vsel %vm535, %v537, %v533
    %v539 = vmul.f32 1.0, %v538
    %v540 = vtanh.pop %v520
    %v542 = vrot.slane %v489, 6
    %v544 = vmul.f32 %v539, %v542
    %546 = vrot.lane.b32.xlu0 %v540, 64
    %v547 = vpop.permute.xlu0 %546
    %v549 = vmul.f32 %v539, %v547
    %551 = vrot.lane.b32.xlu0 %v549, 32
    %v552 = vpop.permute.xlu0 %551
    %v554 = vadd.f32 %v544, %v552
    %v555 = vtanh.pop %v554
    %557 = vrot.lane.b32.xlu0 %v555, 64
    %v558 = vpop.permute.xlu0 %557
    %v560 = vmul.f32 %v539, %v558
    %v561 = vpack.c.bf16 %v560, %v560
    %v563 = vrot.slane %v561, 2
    %564 = vrot.lane.b32.xlu0 %v563, 32
    %v565 = vpop.permute.xlu0 %564
    %v567 = vsel %vm121, %v565, 0
    %569 = vmatpush.bf16.msra.mxu0 0
    %570 = vmatpush.bf16.msra.mxu0 0
    %571 = vmatpush.bf16.msra.mxu0 0
    %572 = vmatpush.bf16.msra.mxu0 0
    %573 = vmatpush.bf16.msra.mxu0 0
    %574 = vmatpush.bf16.msra.mxu0 0
    %575 = vmatpush.bf16.msra.mxu0 %v118
    %576 = vmatpush.bf16.msra.mxu0 %v117
    %577 = vmatmul.bf16.gmra.mxu0 %v567
    %v578 = vpop.f32.mrf.mxu0
    %v579 = vadd.f32 0.0, %v578
    %v580 = vpop.f32.mrf.mxu0
    %581 = vdwg.mxu0
    %v583 = vrot.slane %v579, 2
    %v585 = vadd.f32 %v103, %v583
    %v586 = vxor.u32 %v585, 2147483648
    %v587 = vmul.f32 %v586, 1.442695
    %v588 = vpow.pop %v587
    %v589 = vadd.f32 %v588, 1.0
    %v590 = vrcp.pop %v589
    %v591 = vmul.f32 %v589, %v590
    %v592 = vsub.f32 1.0, %v591
    %v593 = vmul.f32 %v590, %v592
    %v594 = vadd.f32 %v590, %v593
    %vm595 = vweird.f32 %v589
    %vm596 = vweird.f32 %v590
    %vm597 = vmor %vm595, %vm596
    %v598 = vsel %vm597, %v590, %v594
    %v599 = vand.u32 2147483647, %v589
    %vm600 = vcmp.eq.f32.partialorder %v599, 8.507059e+37
    %v601 = vand.u32 %v589, 2147483648
    %v602 = vor.u32 1.1754944e-38, %v601
    %v603 = vsel %vm600, %v602, %v598
    %v604 = vmul.f32 1.0, %v603
    %v605 = vtanh.pop %v585
    %v607 = vrot.slane %v554, 6
    %v609 = vmul.f32 %v604, %v607
    %611 = vrot.lane.b32.xlu0 %v605, 64
    %v612 = vpop.permute.xlu0 %611
    %v614 = vmul.f32 %v604, %v612
    %616 = vrot.lane.b32.xlu0 %v614, 32
    %v617 = vpop.permute.xlu0 %616
    %v619 = vadd.f32 %v609, %v617
    %v620 = vtanh.pop %v619
    %622 = vrot.lane.b32.xlu0 %v620, 64
    %v623 = vpop.permute.xlu0 %622
    %v625 = vmul.f32 %v604, %v623
    %v626 = vld [vmem:[%s1] sm:$0xff]
    %v627 = vpack.c.bf16 %v626, %v626
    %v628 = vld [vmem:[%s7] sm:$0xf]
    %v629 = vld [vmem:[%s7 + $0x4] sm:$0x3]
    %v630 = vld [vmem:[%s10] sm:$0x1]
    %v632 = vperm.slane %v630, 0
    %v636 = vunpack.c.l.b16 %v628
    %v637 = vunpack.c.l.b16 %v629
    %v638 = vpack.c.b16 %v637, %v636
    %vm639 = vcmask 89088
    %v641 = vsel %vm639, %v627, 0
    %vm643 = vcmask 1044480
    %v644 = vsel %vm643, 4294967295, 65535
    %v645 = vsel %vm87, %v644, 0
    %v647 = vand.u32 %v638, %v645
    %649 = vmatpush.bf16.msra.mxu0 0
    %650 = vmatpush.bf16.msra.mxu0 0
    %651 = vmatpush.bf16.msra.mxu0 0
    %652 = vmatpush.bf16.msra.mxu0 0
    %653 = vmatpush.bf16.msra.mxu0 0
    %654 = vmatpush.bf16.msra.mxu0 0
    %655 = vmatpush.bf16.msra.mxu0 0
    %656 = vmatpush.bf16.msra.mxu0 %v647
    %657 = vmatmul.bf16.gmra.mxu0 %v641
    %v658 = vpop.f32.mrf.mxu0
    %v659 = vadd.f32 %v632, %v658
    %v660 = vpop.f32.mrf.mxu0
    %661 = vdwg.mxu0
    %v662 = vld [vmem:[%s3] sm:$0x3]
    %v663 = vpack.c.bf16 %v662, %v662
    %v664 = vld [vmem:[%s11] sm:$0xf]
    %v665 = vld [vmem:[%s13] sm:$0x1]
    %v667 = vperm.slane %v665, 0
    %vm669 = vcmask 56320
    %v671 = vsel %vm669, %v663, 0
    %vm673 = vcmask 1042432
    %vm674 = vcmask 1043456
    %v675 = vsel %vm673, 4294967295, 65535
    %v676 = vsel %vm674, %v675, 0
    %v678 = vand.u32 %v664, %v676
    %680 = vmatpush.bf16.msra.mxu0 0
    %681 = vmatpush.bf16.msra.mxu0 0
    %682 = vmatpush.bf16.msra.mxu0 0
    %683 = vmatpush.bf16.msra.mxu0 0
    %684 = vmatpush.bf16.msra.mxu0 0
    %685 = vmatpush.bf16.msra.mxu0 0
    %686 = vmatpush.bf16.msra.mxu0 0
    %687 = vmatpush.bf16.msra.mxu0 %v678
    %688 = vmatmul.bf16.gmra.mxu0 %v671
    %v689 = vpop.f32.mrf.mxu0
    %v690 = vadd.f32 %v667, %v689
    %v691 = vpop.f32.mrf.mxu0
    %692 = vdwg.mxu0
    %v693 = vld [vmem:[%s9] sm:$0xf]
    %v694 = vld [vmem:[%s9 + $0x4] sm:$0xf]
    %v695 = vld [vmem:[%s9 + $0x8] sm:$0xf]
    %v696 = vld [vmem:[%s9 + $0xc] sm:$0xf]
    %v697 = vld [vmem:[%s8] sm:$0x1]
    %v698 = vld [vmem:[%s12] sm:$0xf]
    %v699 = vld [vmem:[%s12 + $0x4] sm:$0xf]
    %v700 = vld [vmem:[%s12 + $0x8] sm:$0xf]
    %v701 = vld [vmem:[%s12 + $0xc] sm:$0xf]
    %v702 = vld [vmem:[%s14] sm:$0xf]
    %v703 = vld [vmem:[%s14 + $0x4] sm:$0xf]
    %v704 = vld [vmem:[%s14 + $0x8] sm:$0xf]
    %v705 = vld [vmem:[%s14 + $0xc] sm:$0xf]
    %v706 = vld [vmem:[%s14 + $0x10] sm:$0xf]
    %v707 = vld [vmem:[%s14 + $0x14] sm:$0xf]
    %v708 = vld [vmem:[%s14 + $0x18] sm:$0xf]
    %v709 = vld [vmem:[%s14 + $0x1c] sm:$0xf]
    %v710 = vld [vmem:[%s14 + $0x20] sm:$0xf]
    %v711 = vld [vmem:[%s14 + $0x24] sm:$0xf]
    %v712 = vld [vmem:[%s14 + $0x28] sm:$0xf]
    %v713 = vld [vmem:[%s14 + $0x2c] sm:$0xf]
    %v714 = vld [vmem:[%s14 + $0x30] sm:$0xf]
    %v715 = vld [vmem:[%s14 + $0x34] sm:$0xf]
    %v716 = vld [vmem:[%s14 + $0x38] sm:$0xf]
    %v717 = vld [vmem:[%s14 + $0x3c] sm:$0xf]
    %v718 = vld [vmem:[%s16] sm:$0xf]
    %v719 = vld [vmem:[%s16 + $0x4] sm:$0xf]
    %v720 = vld [vmem:[%s16 + $0x8] sm:$0xf]
    %v721 = vld [vmem:[%s16 + $0xc] sm:$0xf]
    %v722 = vld [vmem:[%s16 + $0x10] sm:$0xf]
    %v723 = vld [vmem:[%s16 + $0x14] sm:$0xf]
    %v724 = vld [vmem:[%s16 + $0x18] sm:$0xf]
    %v725 = vld [vmem:[%s16 + $0x1c] sm:$0xf]
    %v726 = vld [vmem:[%s18] sm:$0xff]
    %v727 = vld [vmem:[%s18 + $0x8] sm:$0xff]
    %v728 = vld [vmem:[%s18 + $0x10] sm:$0xff]
    %v729 = vld [vmem:[%s18 + $0x18] sm:$0xff]
    %v730 = vld [vmem:[%s15] sm:$0x1]
    %v732 = vperm.slane %v730, 0
    %v734 = vld [vmem:[%s17] sm:$0x1]
    %v736 = vperm.slane %v734, 0
    %v738 = vld [vmem:[#allocation2] sm:$0x1]
    %v740 = vperm.slane %v738, 0
    %v742 = vld [vmem:[%s2] sm:$0x3]
    %744 = vset.pattern.permute.xlu0 0
    %745 = vperm.xlu0 %744, %v742
    %v746 = vpop.permute.xlu0 %745
    %v749 = vperm.slane %v697, 0
    %v751 = vmul.f32 %v746, %v749
    %v752 = vadd.f32 %v659, %v751
    %v753 = vpack.c.bf16 %v625, %v625
    %v755 = vrot.slane %v753, 3
    %756 = vrot.lane.b32.xlu0 %v755, 32
    %v757 = vpop.permute.xlu0 %756
    %v762 = vunpack.c.l.b16 %v693
    %v763 = vunpack.c.l.b16 %v694
    %v764 = vunpack.c.l.b16 %v695
    %v765 = vunpack.c.l.b16 %v696
    %v766 = vpack.c.b16 %v763, %v762
    %v767 = vpack.c.b16 %v765, %v764
    %v771 = vsel %vm121, %v757, 0
    %773 = vmatpush.bf16.msra.mxu0 0
    %774 = vmatpush.bf16.msra.mxu0 0
    %775 = vmatpush.bf16.msra.mxu0 0
    %776 = vmatpush.bf16.msra.mxu0 0
    %777 = vmatpush.bf16.msra.mxu0 0
    %778 = vmatpush.bf16.msra.mxu0 0
    %779 = vmatpush.bf16.msra.mxu0 %v767
    %780 = vmatpush.bf16.msra.mxu0 %v766
    %781 = vmatmul.bf16.gmra.mxu0 %v771
    %v782 = vpop.f32.mrf.mxu0
    %v783 = vadd.f32 0.0, %v782
    %v784 = vpop.f32.mrf.mxu0
    %785 = vdwg.mxu0
    %v786 = vadd.f32 %v752, %v783
    %v787 = vxor.u32 %v786, 2147483648
    %v788 = vmul.f32 %v787, 1.442695
    %v789 = vpow.pop %v788
    %v790 = vadd.f32 %v789, 1.0
    %v791 = vrcp.pop %v790
    %v792 = vmul.f32 %v790, %v791
    %v793 = vsub.f32 1.0, %v792
    %v794 = vmul.f32 %v791, %v793
    %v795 = vadd.f32 %v791, %v794
    %vm796 = vweird.f32 %v790
    %vm797 = vweird.f32 %v791
    %vm798 = vmor %vm796, %vm797
    %v799 = vsel %vm798, %v791, %v795
    %v800 = vand.u32 2147483647, %v790
    %vm801 = vcmp.eq.f32.partialorder %v800, 8.507059e+37
    %v802 = vand.u32 %v790, 2147483648
    %v803 = vor.u32 1.1754944e-38, %v802
    %v804 = vsel %vm801, %v803, %v799
    %v805 = vmul.f32 1.0, %v804
    %v806 = vtanh.pop %v786
    %v808 = vrot.slane %v619, 6
    %v810 = vmul.f32 %v805, %v808
    %812 = vrot.lane.b32.xlu0 %v806, 64
    %v813 = vpop.permute.xlu0 %812
    %v815 = vmul.f32 %v805, %v813
    %817 = vrot.lane.b32.xlu0 %v815, 32
    %v818 = vpop.permute.xlu0 %817
    %v820 = vadd.f32 %v810, %v818
    %v821 = vtanh.pop %v820
    %823 = vrot.lane.b32.xlu0 %v821, 64
    %v824 = vpop.permute.xlu0 %823
    %v826 = vmul.f32 %v805, %v824
    %v827 = vpack.c.bf16 %v826, %v826
    %829 = vrot.lane.b32.xlu0 %v827, 32
    %v830 = vpop.permute.xlu0 %829
    %v835 = vunpack.c.l.b16 %v698
    %v836 = vunpack.c.l.b16 %v699
    %v837 = vunpack.c.l.b16 %v700
    %v838 = vunpack.c.l.b16 %v701
    %v839 = vpack.c.b16 %v836, %v835
    %v840 = vpack.c.b16 %v838, %v837
    %v844 = vsel %vm121, %v830, 0
    %846 = vmatpush.bf16.msra.mxu0 0
    %847 = vmatpush.bf16.msra.mxu0 0
    %848 = vmatpush.bf16.msra.mxu0 0
    %849 = vmatpush.bf16.msra.mxu0 0
    %850 = vmatpush.bf16.msra.mxu0 0
    %851 = vmatpush.bf16.msra.mxu0 0
    %852 = vmatpush.bf16.msra.mxu0 %v840
    %853 = vmatpush.bf16.msra.mxu0 %v839
    %854 = vmatmul.bf16.gmra.mxu0 %v844
    %v855 = vpop.f32.mrf.mxu0
    %v856 = vadd.f32 0.0, %v855
    %v857 = vpop.f32.mrf.mxu0
    %858 = vdwg.mxu0
    %v859 = vadd.f32 %v690, %v856
    %v860 = vmax.f32 %v859, 0.0
    %v861 = vpack.c.bf16 %v860, %v860
    %v878 = vunpack.c.l.b16 %v702
    %v879 = vunpack.c.l.b16 %v703
    %v880 = vunpack.c.l.b16 %v704
    %v881 = vunpack.c.l.b16 %v705
    %v882 = vunpack.c.l.b16 %v706
    %v883 = vunpack.c.l.b16 %v707
    %v884 = vunpack.c.l.b16 %v708
    %v885 = vunpack.c.l.b16 %v709
    %v886 = vunpack.c.l.b16 %v710
    %v887 = vunpack.c.l.b16 %v711
    %v888 = vunpack.c.l.b16 %v712
    %v889 = vunpack.c.l.b16 %v713
    %v890 = vunpack.c.l.b16 %v714
    %v891 = vunpack.c.l.b16 %v715
    %v892 = vunpack.c.l.b16 %v716
    %v893 = vunpack.c.l.b16 %v717
    %v894 = vpack.c.b16 %v879, %v878
    %v895 = vpack.c.b16 %v881, %v880
    %v896 = vpack.c.b16 %v883, %v882
    %v897 = vpack.c.b16 %v885, %v884
    %v898 = vpack.c.b16 %v887, %v886
    %v899 = vpack.c.b16 %v889, %v888
    %v900 = vpack.c.b16 %v891, %v890
    %v901 = vpack.c.b16 %v893, %v892
    %910 = vmatpush.bf16.msra.mxu0 %v901
    %911 = vmatpush.bf16.msra.mxu0 %v900
    %912 = vmatpush.bf16.msra.mxu0 %v899
    %913 = vmatpush.bf16.msra.mxu0 %v898
    %914 = vmatpush.bf16.msra.mxu0 %v897
    %915 = vmatpush.bf16.msra.mxu0 %v896
    %916 = vmatpush.bf16.msra.mxu0 %v895
    %917 = vmatpush.bf16.msra.mxu0 %v894
    %918 = vmatmul.bf16.gmra.mxu0 %v861
    %v919 = vpop.f32.mrf.mxu0
    %v920 = vadd.f32 %v732, %v919
    %v921 = vpop.f32.mrf.mxu0
    %922 = vdwg.mxu0
    %v923 = vmax.f32 %v920, 0.0
    %v924 = vpack.c.bf16 %v923, %v923
    %v933 = vunpack.c.l.b16 %v718
    %v934 = vunpack.c.l.b16 %v719
    %v935 = vunpack.c.l.b16 %v720
    %v936 = vunpack.c.l.b16 %v721
    %v937 = vunpack.c.l.b16 %v722
    %v938 = vunpack.c.l.b16 %v723
    %v939 = vunpack.c.l.b16 %v724
    %v940 = vunpack.c.l.b16 %v725
    %v941 = vpack.c.b16 %v934, %v933
    %v942 = vpack.c.b16 %v936, %v935
    %v943 = vpack.c.b16 %v938, %v937
    %v944 = vpack.c.b16 %v940, %v939
    %vm949 = vcmask 523264
    %v951 = vsel %vm949, %v924, 0
    %953 = vmatpush.bf16.msra.mxu0 0
    %954 = vmatpush.bf16.msra.mxu0 0
    %955 = vmatpush.bf16.msra.mxu0 0
    %956 = vmatpush.bf16.msra.mxu0 0
    %957 = vmatpush.bf16.msra.mxu0 %v944
    %958 = vmatpush.bf16.msra.mxu0 %v943
    %959 = vmatpush.bf16.msra.mxu0 %v942
    %960 = vmatpush.bf16.msra.mxu0 %v941
    %961 = vmatmul.bf16.gmra.mxu0 %v951
    %v962 = vpop.f32.mrf.mxu0
    %v963 = vadd.f32 %v736, %v962
    %v964 = vpop.f32.mrf.mxu0
    %965 = vdwg.mxu0
    %v966 = vmax.f32 %v963, 0.0
    %v968 = vsel %vm121, %v966, 0
    %970 = vmatpush.msra.mxu0 0.0
    %971 = vmatpush.msra.mxu0 0.0
    %972 = vmatpush.msra.mxu0 0.0
    %973 = vmatpush.msra.mxu0 0.0
    %974 = vmatpush.msra.mxu0 0.0
    %975 = vmatpush.msra.mxu0 0.0
    %976 = vmatpush.msra.mxu0 0.0
    %977 = vmatpush.msra.mxu0 0.0
    %978 = vmatpush.msra.mxu0 0.0
    %979 = vmatpush.msra.mxu0 0.0
    %980 = vmatpush.msra.mxu0 0.0
    %981 = vmatpush.msra.mxu0 0.0
    %982 = vmatpush.msra.mxu0 %v729
    %983 = vmatpush.msra.mxu0 %v728
    %984 = vmatpush.msra.mxu0 %v727
    %985 = vmatpush.msra.mxu0 %v726
    %986 = vmatmul.f32.gmra.mxu0 %v968
    %v987 = vpop.f32.mrf.mxu0
    %v988 = vadd.f32 %v740, %v987
    %989 = vdwg.mxu0
    %v990 = vmax.f32 %v988, 0.0
    %992 = vset.pattern.permute.xlu0 0
    %993 = vperm.xlu0 %992, %v990
    %v994 = vpop.permute.xlu0 %993
    %v996 = vmul.f32 %v994, %v749
    %v998 = vrot.slane %v996, 6
    %v1000 = vadd.f32 %v659, %v998
    %1001 = vmatpush.bf16.msra.mxu0 0
    %1002 = vmatpush.bf16.msra.mxu0 0
    %1003 = vmatpush.bf16.msra.mxu0 0
    %1004 = vmatpush.bf16.msra.mxu0 0
    %1005 = vmatpush.bf16.msra.mxu0 0
    %1006 = vmatpush.bf16.msra.mxu0 0
    %1007 = vmatpush.bf16.msra.mxu0 %v767
    %1008 = vmatpush.bf16.msra.mxu0 %v766
    %1009 = vmatmul.bf16.gmra.mxu0 %v844
    %v1010 = vpop.f32.mrf.mxu0
    %v1011 = vadd.f32 0.0, %v1010
    %v1012 = vpop.f32.mrf.mxu0
    %1013 = vdwg.mxu0
    %v1015 = vrot.slane %v1011, 6
    %v1017 = vadd.f32 %v1000, %v1015
    %v1018 = vxor.u32 %v1017, 2147483648
    %v1019 = vmul.f32 %v1018, 1.442695
    %v1020 = vpow.pop %v1019
    %v1021 = vadd.f32 %v1020, 1.0
    %v1022 = vrcp.pop %v1021
    %v1023 = vmul.f32 %v1021, %v1022
    %v1024 = vsub.f32 1.0, %v1023
    %v1025 = vmul.f32 %v1022, %v1024
    %v1026 = vadd.f32 %v1022, %v1025
    %vm1027 = vweird.f32 %v1021
    %vm1028 = vweird.f32 %v1022
    %vm1029 = vmor %vm1027, %vm1028
    %v1030 = vsel %vm1029, %v1022, %v1026
    %v1031 = vand.u32 2147483647, %v1021
    %vm1032 = vcmp.eq.f32.partialorder %v1031, 8.507059e+37
    %v1033 = vand.u32 %v1021, 2147483648
    %v1034 = vor.u32 1.1754944e-38, %v1033
    %v1035 = vsel %vm1032, %v1034, %v1030
    %v1036 = vmul.f32 1.0, %v1035
    %v1037 = vtanh.pop %v1017
    %v1039 = vrot.slane %v820, 6
    %v1041 = vmul.f32 %v1036, %v1039
    %1043 = vrot.lane.b32.xlu0 %v1037, 64
    %v1044 = vpop.permute.xlu0 %1043
    %v1046 = vmul.f32 %v1036, %v1044
    %1048 = vrot.lane.b32.xlu0 %v1046, 32
    %v1049 = vpop.permute.xlu0 %1048
    %v1051 = vadd.f32 %v1041, %v1049
    %v1052 = vtanh.pop %v1051
    %1054 = vrot.lane.b32.xlu0 %v1052, 64
    %v1055 = vpop.permute.xlu0 %1054
    %v1057 = vmul.f32 %v1036, %v1055
    %v1058 = vpack.c.bf16 %v1057, %v1057
    %v1060 = vrot.slane %v1058, 1
    %1061 = vrot.lane.b32.xlu0 %v1060, 32
    %v1062 = vpop.permute.xlu0 %1061
    %v1064 = vsel %vm121, %v1062, 0
    %1066 = vmatpush.bf16.msra.mxu0 0
    %1067 = vmatpush.bf16.msra.mxu0 0
    %1068 = vmatpush.bf16.msra.mxu0 0
    %1069 = vmatpush.bf16.msra.mxu0 0
    %1070 = vmatpush.bf16.msra.mxu0 0
    %1071 = vmatpush.bf16.msra.mxu0 0
    %1072 = vmatpush.bf16.msra.mxu0 %v840
    %1073 = vmatpush.bf16.msra.mxu0 %v839
    %1074 = vmatmul.bf16.gmra.mxu0 %v1064
    %v1075 = vpop.f32.mrf.mxu0
    %v1076 = vadd.f32 0.0, %v1075
    %v1077 = vpop.f32.mrf.mxu0
    %1078 = vdwg.mxu0
    %v1079 = vadd.f32 %v690, %v1076
    %v1080 = vmax.f32 %v1079, 0.0
    %v1081 = vpack.c.bf16 %v1080, %v1080
    %1082 = vmatpush.bf16.msra.mxu0 %v901
    %1083 = vmatpush.bf16.msra.mxu0 %v900
    %1084 = vmatpush.bf16.msra.mxu0 %v899
    %1085 = vmatpush.bf16.msra.mxu0 %v898
    %1086 = vmatpush.bf16.msra.mxu0 %v897
    %1087 = vmatpush.bf16.msra.mxu0 %v896
    %1088 = vmatpush.bf16.msra.mxu0 %v895
    %1089 = vmatpush.bf16.msra.mxu0 %v894
    %1090 = vmatmul.bf16.gmra.mxu0 %v1081
    %v1091 = vpop.f32.mrf.mxu0
    %v1092 = vadd.f32 %v732, %v1091
    %v1093 = vpop.f32.mrf.mxu0
    %1094 = vdwg.mxu0
    %v1095 = vmax.f32 %v1092, 0.0
    %v1096 = vpack.c.bf16 %v1095, %v1095
    %v1098 = vsel %vm949, %v1096, 0
    %1100 = vmatpush.bf16.msra.mxu0 0
    %1101 = vmatpush.bf16.msra.mxu0 0
    %1102 = vmatpush.bf16.msra.mxu0 0
    %1103 = vmatpush.bf16.msra.mxu0 0
    %1104 = vmatpush.bf16.msra.mxu0 %v944
    %1105 = vmatpush.bf16.msra.mxu0 %v943
    %1106 = vmatpush.bf16.msra.mxu0 %v942
    %1107 = vmatpush.bf16.msra.mxu0 %v941
    %1108 = vmatmul.bf16.gmra.mxu0 %v1098
    %v1109 = vpop.f32.mrf.mxu0
    %v1110 = vadd.f32 %v736, %v1109
    %v1111 = vpop.f32.mrf.mxu0
    %1112 = vdwg.mxu0
    %v1113 = vmax.f32 %v1110, 0.0
    %v1115 = vsel %vm121, %v1113, 0
    %1117 = vmatpush.msra.mxu0 0.0
    %1118 = vmatpush.msra.mxu0 0.0
    %1119 = vmatpush.msra.mxu0 0.0
    %1120 = vmatpush.msra.mxu0 0.0
    %1121 = vmatpush.msra.mxu0 0.0
    %1122 = vmatpush.msra.mxu0 0.0
    %1123 = vmatpush.msra.mxu0 0.0
    %1124 = vmatpush.msra.mxu0 0.0
    %1125 = vmatpush.msra.mxu0 0.0
    %1126 = vmatpush.msra.mxu0 0.0
    %1127 = vmatpush.msra.mxu0 0.0
    %1128 = vmatpush.msra.mxu0 0.0
    %1129 = vmatpush.msra.mxu0 %v729
    %1130 = vmatpush.msra.mxu0 %v728
    %1131 = vmatpush.msra.mxu0 %v727
    %1132 = vmatpush.msra.mxu0 %v726
    %1133 = vmatmul.f32.gmra.mxu0 %v1115
    %v1134 = vpop.f32.mrf.mxu0
    %v1135 = vadd.f32 %v740, %v1134
    %1136 = vdwg.mxu0
    %v1137 = vmax.f32 %v1135, 0.0
    %1139 = vset.pattern.permute.xlu0 0
    %1140 = vperm.xlu0 %1139, %v1137
    %v1141 = vpop.permute.xlu0 %1140
    %v1143 = vmul.f32 %v1141, %v749
    %v1145 = vrot.slane %v1143, 4
    %v1147 = vadd.f32 %v659, %v1145
    %1148 = vmatpush.bf16.msra.mxu0 0
    %1149 = vmatpush.bf16.msra.mxu0 0
    %1150 = vmatpush.bf16.msra.mxu0 0
    %1151 = vmatpush.bf16.msra.mxu0 0
    %1152 = vmatpush.bf16.msra.mxu0 0
    %1153 = vmatpush.bf16.msra.mxu0 0
    %1154 = vmatpush.bf16.msra.mxu0 %v767
    %1155 = vmatpush.bf16.msra.mxu0 %v766
    %1156 = vmatmul.bf16.gmra.mxu0 %v1064
    %v1157 = vpop.f32.mrf.mxu0
    %v1158 = vadd.f32 0.0, %v1157
    %v1159 = vpop.f32.mrf.mxu0
    %1160 = vdwg.mxu0
    %v1162 = vrot.slane %v1158, 4
    %v1164 = vadd.f32 %v1147, %v1162
    %v1165 = vxor.u32 %v1164, 2147483648
    %v1166 = vmul.f32 %v1165, 1.442695
    %v1167 = vpow.pop %v1166
    %v1168 = vadd.f32 %v1167, 1.0
    %v1169 = vrcp.pop %v1168
    %v1170 = vmul.f32 %v1168, %v1169
    %v1171 = vsub.f32 1.0, %v1170
    %v1172 = vmul.f32 %v1169, %v1171
    %v1173 = vadd.f32 %v1169, %v1172
    %vm1174 = vweird.f32 %v1168
    %vm1175 = vweird.f32 %v1169
    %vm1176 = vmor %vm1174, %vm1175
    %v1177 = vsel %vm1176, %v1169, %v1173
    %v1178 = vand.u32 2147483647, %v1168
    %vm1179 = vcmp.eq.f32.partialorder %v1178, 8.507059e+37
    %v1180 = vand.u32 %v1168, 2147483648
    %v1181 = vor.u32 1.1754944e-38, %v1180
    %v1182 = vsel %vm1179, %v1181, %v1177
    %v1183 = vmul.f32 1.0, %v1182
    %v1184 = vtanh.pop %v1164
    %v1186 = vrot.slane %v1051, 6
    %v1188 = vmul.f32 %v1183, %v1186
    %1190 = vrot.lane.b32.xlu0 %v1184, 64
    %v1191 = vpop.permute.xlu0 %1190
    %v1193 = vmul.f32 %v1183, %v1191
    %1195 = vrot.lane.b32.xlu0 %v1193, 32
    %v1196 = vpop.permute.xlu0 %1195
    %v1198 = vadd.f32 %v1188, %v1196
    %v1199 = vtanh.pop %v1198
    %1201 = vrot.lane.b32.xlu0 %v1199, 64
    %v1202 = vpop.permute.xlu0 %1201
    %v1204 = vmul.f32 %v1183, %v1202
    %v1205 = vpack.c.bf16 %v1204, %v1204
    %v1207 = vrot.slane %v1205, 2
    %1208 = vrot.lane.b32.xlu0 %v1207, 32
    %v1209 = vpop.permute.xlu0 %1208
    %v1211 = vsel %vm121, %v1209, 0
    %1213 = vmatpush.bf16.msra.mxu0 0
    %1214 = vmatpush.bf16.msra.mxu0 0
    %1215 = vmatpush.bf16.msra.mxu0 0
    %1216 = vmatpush.bf16.msra.mxu0 0
    %1217 = vmatpush.bf16.msra.mxu0 0
    %1218 = vmatpush.bf16.msra.mxu0 0
    %1219 = vmatpush.bf16.msra.mxu0 %v840
    %1220 = vmatpush.bf16.msra.mxu0 %v839
    %1221 = vmatmul.bf16.gmra.mxu0 %v1211
    %v1222 = vpop.f32.mrf.mxu0
    %v1223 = vadd.f32 0.0, %v1222
    %v1224 = vpop.f32.mrf.mxu0
    %1225 = vdwg.mxu0
    %v1226 = vadd.f32 %v690, %v1223
    %v1227 = vmax.f32 %v1226, 0.0
    %v1228 = vpack.c.bf16 %v1227, %v1227
    %1229 = vmatpush.bf16.msra.mxu0 %v901
    %1230 = vmatpush.bf16.msra.mxu0 %v900
    %1231 = vmatpush.bf16.msra.mxu0 %v899
    %1232 = vmatpush.bf16.msra.mxu0 %v898
    %1233 = vmatpush.bf16.msra.mxu0 %v897
    %1234 = vmatpush.bf16.msra.mxu0 %v896
    %1235 = vmatpush.bf16.msra.mxu0 %v895
    %1236 = vmatpush.bf16.msra.mxu0 %v894
    %1237 = vmatmul.bf16.gmra.mxu0 %v1228
    %v1238 = vpop.f32.mrf.mxu0
    %v1239 = vadd.f32 %v732, %v1238
    %v1240 = vpop.f32.mrf.mxu0
    %1241 = vdwg.mxu0
    %v1242 = vmax.f32 %v1239, 0.0
    %v1243 = vpack.c.bf16 %v1242, %v1242
    %v1245 = vsel %vm949, %v1243, 0
    %1247 = vmatpush.bf16.msra.mxu0 0
    %1248 = vmatpush.bf16.msra.mxu0 0
    %1249 = vmatpush.bf16.msra.mxu0 0
    %1250 = vmatpush.bf16.msra.mxu0 0
    %1251 = vmatpush.bf16.msra.mxu0 %v944
    %1252 = vmatpush.bf16.msra.mxu0 %v943
    %1253 = vmatpush.bf16.msra.mxu0 %v942
    %1254 = vmatpush.bf16.msra.mxu0 %v941
    %1255 = vmatmul.bf16.gmra.mxu0 %v1245
    %v1256 = vpop.f32.mrf.mxu0
    %v1257 = vadd.f32 %v736, %v1256
    %v1258 = vpop.f32.mrf.mxu0
    %1259 = vdwg.mxu0
    %v1260 = vmax.f32 %v1257, 0.0
    %v1262 = vsel %vm121, %v1260, 0
    %1264 = vmatpush.msra.mxu0 0.0
    %1265 = vmatpush.msra.mxu0 0.0
    %1266 = vmatpush.msra.mxu0 0.0
    %1267 = vmatpush.msra.mxu0 0.0
    %1268 = vmatpush.msra.mxu0 0.0
    %1269 = vmatpush.msra.mxu0 0.0
    %1270 = vmatpush.msra.mxu0 0.0
    %1271 = vmatpush.msra.mxu0 0.0
    %1272 = vmatpush.msra.mxu0 0.0
    %1273 = vmatpush.msra.mxu0 0.0
    %1274 = vmatpush.msra.mxu0 0.0
    %1275 = vmatpush.msra.mxu0 0.0
    %1276 = vmatpush.msra.mxu0 %v729
    %1277 = vmatpush.msra.mxu0 %v728
    %1278 = vmatpush.msra.mxu0 %v727
    %1279 = vmatpush.msra.mxu0 %v726
    %1280 = vmatmul.f32.gmra.mxu0 %v1262
    %v1281 = vpop.f32.mrf.mxu0
    %v1282 = vadd.f32 %v740, %v1281
    %1283 = vdwg.mxu0
    %v1284 = vmax.f32 %v1282, 0.0
    %1286 = vset.pattern.permute.xlu0 0
    %1287 = vperm.xlu0 %1286, %v1284
    %v1288 = vpop.permute.xlu0 %1287
    %v1290 = vmul.f32 %v1288, %v749
    %v1292 = vrot.slane %v1290, 2
    %v1294 = vadd.f32 %v659, %v1292
    %1295 = vmatpush.bf16.msra.mxu0 0
    %1296 = vmatpush.bf16.msra.mxu0 0
    %1297 = vmatpush.bf16.msra.mxu0 0
    %1298 = vmatpush.bf16.msra.mxu0 0
    %1299 = vmatpush.bf16.msra.mxu0 0
    %1300 = vmatpush.bf16.msra.mxu0 0
    %1301 = vmatpush.bf16.msra.mxu0 %v767
    %1302 = vmatpush.bf16.msra.mxu0 %v766
    %1303 = vmatmul.bf16.gmra.mxu0 %v1211
    %v1304 = vpop.f32.mrf.mxu0
    %v1305 = vadd.f32 0.0, %v1304
    %v1306 = vpop.f32.mrf.mxu0
    %1307 = vdwg.mxu0
    %v1309 = vrot.slane %v1305, 2
    %v1311 = vadd.f32 %v1294, %v1309
    %v1312 = vxor.u32 %v1311, 2147483648
    %v1313 = vmul.f32 %v1312, 1.442695
    %v1314 = vpow.pop %v1313
    %v1315 = vadd.f32 %v1314, 1.0
    %v1316 = vrcp.pop %v1315
    %v1317 = vmul.f32 %v1315, %v1316
    %v1318 = vsub.f32 1.0, %v1317
    %v1319 = vmul.f32 %v1316, %v1318
    %v1320 = vadd.f32 %v1316, %v1319
    %vm1321 = vweird.f32 %v1315
    %vm1322 = vweird.f32 %v1316
    %vm1323 = vmor %vm1321, %vm1322
    %v1324 = vsel %vm1323, %v1316, %v1320
    %v1325 = vand.u32 2147483647, %v1315
    %vm1326 = vcmp.eq.f32.partialorder %v1325, 8.507059e+37
    %v1327 = vand.u32 %v1315, 2147483648
    %v1328 = vor.u32 1.1754944e-38, %v1327
    %v1329 = vsel %vm1326, %v1328, %v1324
    %v1330 = vmul.f32 1.0, %v1329
    %v1331 = vtanh.pop %v1311
    %v1333 = vrot.slane %v1198, 6
    %v1335 = vmul.f32 %v1330, %v1333
    %1337 = vrot.lane.b32.xlu0 %v1331, 64
    %v1338 = vpop.permute.xlu0 %1337
    %v1340 = vmul.f32 %v1330, %v1338
    %1342 = vrot.lane.b32.xlu0 %v1340, 32
    %v1343 = vpop.permute.xlu0 %1342
    %v1345 = vadd.f32 %v1335, %v1343
    %v1346 = vtanh.pop %v1345
    %1348 = vrot.lane.b32.xlu0 %v1346, 64
    %v1349 = vpop.permute.xlu0 %1348
    %v1351 = vmul.f32 %v1330, %v1349
    %v1352 = vpack.c.bf16 %v1351, %v1351
    %v1354 = vrot.slane %v1352, 3
    %1355 = vrot.lane.b32.xlu0 %v1354, 32
    %v1356 = vpop.permute.xlu0 %1355
    %v1358 = vsel %vm121, %v1356, 0
    %1360 = vmatpush.bf16.msra.mxu0 0
    %1361 = vmatpush.bf16.msra.mxu0 0
    %1362 = vmatpush.bf16.msra.mxu0 0
    %1363 = vmatpush.bf16.msra.mxu0 0
    %1364 = vmatpush.bf16.msra.mxu0 0
    %1365 = vmatpush.bf16.msra.mxu0 0
    %1366 = vmatpush.bf16.msra.mxu0 %v840
    %1367 = vmatpush.bf16.msra.mxu0 %v839
    %1368 = vmatmul.bf16.gmra.mxu0 %v1358
    %v1369 = vpop.f32.mrf.mxu0
    %v1370 = vadd.f32 0.0, %v1369
    %v1371 = vpop.f32.mrf.mxu0
    %1372 = vdwg.mxu0
    %v1373 = vadd.f32 %v690, %v1370
    %v1374 = vmax.f32 %v1373, 0.0
    %v1375 = vpack.c.bf16 %v1374, %v1374
    %1376 = vmatpush.bf16.msra.mxu0 %v901
    %1377 = vmatpush.bf16.msra.mxu0 %v900
    %1378 = vmatpush.bf16.msra.mxu0 %v899
    %1379 = vmatpush.bf16.msra.mxu0 %v898
    %1380 = vmatpush.bf16.msra.mxu0 %v897
    %1381 = vmatpush.bf16.msra.mxu0 %v896
    %1382 = vmatpush.bf16.msra.mxu0 %v895
    %1383 = vmatpush.bf16.msra.mxu0 %v894
    %1384 = vmatmul.bf16.gmra.mxu0 %v1375
    %v1385 = vpop.f32.mrf.mxu0
    %v1386 = vadd.f32 %v732, %v1385
    %v1387 = vpop.f32.mrf.mxu0
    %1388 = vdwg.mxu0
    %v1389 = vmax.f32 %v1386, 0.0
    %v1390 = vpack.c.bf16 %v1389, %v1389
    %v1392 = vsel %vm949, %v1390, 0
    %1394 = vmatpush.bf16.msra.mxu0 0
    %1395 = vmatpush.bf16.msra.mxu0 0
    %1396 = vmatpush.bf16.msra.mxu0 0
    %1397 = vmatpush.bf16.msra.mxu0 0
    %1398 = vmatpush.bf16.msra.mxu0 %v944
    %1399 = vmatpush.bf16.msra.mxu0 %v943
    %1400 = vmatpush.bf16.msra.mxu0 %v942
    %1401 = vmatpush.bf16.msra.mxu0 %v941
    %1402 = vmatmul.bf16.gmra.mxu0 %v1392
    %v1403 = vpop.f32.mrf.mxu0
    %v1404 = vadd.f32 %v736, %v1403
    %v1405 = vpop.f32.mrf.mxu0
    %1406 = vdwg.mxu0
    %v1407 = vmax.f32 %v1404, 0.0
    %v1409 = vsel %vm121, %v1407, 0
    %1411 = vmatpush.msra.mxu0 0.0
    %1412 = vmatpush.msra.mxu0 0.0
    %1413 = vmatpush.msra.mxu0 0.0
    %1414 = vmatpush.msra.mxu0 0.0
    %1415 = vmatpush.msra.mxu0 0.0
    %1416 = vmatpush.msra.mxu0 0.0
    %1417 = vmatpush.msra.mxu0 0.0
    %1418 = vmatpush.msra.mxu0 0.0
    %1419 = vmatpush.msra.mxu0 0.0
    %1420 = vmatpush.msra.mxu0 0.0
    %1421 = vmatpush.msra.mxu0 0.0
    %1422 = vmatpush.msra.mxu0 0.0
    %1423 = vmatpush.msra.mxu0 %v729
    %1424 = vmatpush.msra.mxu0 %v728
    %1425 = vmatpush.msra.mxu0 %v727
    %1426 = vmatpush.msra.mxu0 %v726
    %1427 = vmatmul.f32.gmra.mxu0 %v1409
    %v1428 = vpop.f32.mrf.mxu0
    %v1429 = vadd.f32 %v740, %v1428
    %1430 = vdwg.mxu0
    %v1431 = vmax.f32 %v1429, 0.0
    %1432 = vrot.lane.b32.xlu0 %v1137, 1
    %v1433 = vpop.permute.xlu0 %1432
    %1435 = vrot.lane.b32.xlu0 %v1284, 2
    %v1436 = vpop.permute.xlu0 %1435
    %1439 = vrot.lane.b32.xlu0 %v1431, 3
    %v1440 = vpop.permute.xlu0 %1439
    %vm1442 = vcmask 7168
    %v1443 = vsel %vm1442, %v990, %v1433
    %vm1444 = vcmask 15360
    %v1445 = vsel %vm1444, %v1443, %v1436
    %vm1446 = vcmask 23552
    %v1447 = vsel %vm1446, %v1445, %v1440
    %vm1448 = vcmask 31744
    %v1449 = vsel %vm1448, %v1447, 0.0
    %1450 = vst [vmem:[#allocation3] sm:$0x3] %v1449
    // Predicated region
    $region82: #{tpu_custom_call.1} parent=1 // pred_check
      _
    $region83: #{tpu_custom_call.1} parent=1 // pred_check_branch
      %1452 = sbr.rel (0) target = $region85
    $region84: #{tpu_custom_call.1} parent=1 // pred_region
      %1454 = vsyncadd [#allocation4], 0
      %s1456 = sshll.u32 [#allocation3], 4
      %s1457 = int_to_ptr.vmem [resolvable:$true] %s1456
      %s1458 = sshll.u32 %s20, 4
      %s1459 = int_to_ptr.hbm [resolvable:$true] %s1458
      %1461 = dma.vmem_to_hbm [thread:$0]  %s1457, 32, %s1459, [#allocation4]
    $region85: #{tpu_custom_call.1} parent=1 // pred_fallthru
      _
    // Predicated region
    $region86: #{tpu_custom_call.1} parent=1 // pred_check
      _
    $region87: #{tpu_custom_call.1} parent=1 // pred_check_branch
      %1463 = sbr.rel (0) target = $region89
    $region88: #{tpu_custom_call.1} parent=1 // pred_region
      %1465 = dma.done [#allocation4], 32
    $region89: #{tpu_custom_call.1} parent=1 // pred_fallthru
      _
    %1466 = vsyncpa [#allocation4], 1

</llo_original>
